<compile_context>
chip_gen: v7x
topology: tpu7x:2x2x1
jax: 0.10.0
libtpu: 0.0.40
codegen_flags: <defaults>
</compile_context>

<pallas_src>
import jax
import jax.numpy as jnp
import numpy as np
from jax import lax
from jax.experimental import pallas as pl
from jax.experimental.pallas import tpu as pltpu

_NHP = 128  # packed head width fed to the MXU; the pad lanes never reach HBM


def _vmem_limits():
    """(vmem_limit_bytes, per-step tile budget) gated by the chip's VMEM size."""
    try:
        cap = pltpu.get_tpu_info().vmem_capacity_bytes
    except Exception:          # be conservative if the query is unavailable
        cap = 64 << 20         # v7x per-TensorCore VMEM
    vmem_limit = int(min(96 << 20, max(32 << 20, (cap * 3) // 4)))
    tile_budget = int(min(16 << 20, vmem_limit // 3))
    return vmem_limit, tile_budget


def _pick_row_tile(H, W, C1, C2, out_rows_padded, budget_bytes):
    """Largest even divisor of H whose pipelined footprint fits the budget.

    Footprint counts double-buffered I/O blocks (with sublane/lane padding)
    plus ~4 live (th*W, 128) f32 temporaries (y0, y, yt, epilogue slabs).
    All blocks must be lane-aligned (last dim % 128 == 0 or full extent).
    """
    Hh, Wh = H // 2, W // 2
    r8 = lambda n: -(-n // 8) * 8
    r128 = lambda n: -(-n // 128) * 128

    def aligned(th):
        hh = th // 2
        hi_ok = (th * W) % 128 == 0 or th == H
        lo_ok = (hh * Wh) % 128 == 0 or hh == Hh
        return hi_ok and lo_ok

    def footprint(th):
        hh = th // 2
        lanes_hi = r128(th * W)
        lanes_lo = r128(hh * Wh)
        io = 2 * 4 * (r8(C1) * lanes_hi + r8(C2) * lanes_lo        # inputs
                      + out_rows_padded * lanes_hi                 # outputs
                      + r8(C1) * _NHP + r8(C2) * _NHP + 8 * _NHP)  # weights/bias
        temps = 4 * 4 * th * W * _NHP                              # live temporaries
        return io + temps

    cands = [th for th in range(2, H + 1, 2) if H % th == 0 and aligned(th)]
    fits = [th for th in cands if footprint(th) <= budget_bytes]
    if fits:
        return max(fits)
    return min(cands)   # smallest aligned tile; correctness over budget


def agp_neck_fused(x0, x1, params):
    """Fused align_res_layer + group_method + prepare_c_layer.

    x0: (BN, C1, H, W) full-resolution features (NCHW)
    x1: (BN, C2, H/2, W/2) low-resolution features (NCHW)
    Returns (x, depth, opacity) with spatial flattened: (BN, C, H*W) each,
    so the caller only needs a free reshape to NCHW.
    """
    BN, C1, H, W = x0.shape
    _, C2, Hh, Wh = x1.shape
    # TODO(synk): general AGPNeck allows arbitrary scale sets; this realization
    # assumes exactly two inputs with a 2x resolution ratio.
    assert Hh * 2 == H and Wh * 2 == W
    # Layout-free in-kernel reshapes need the row width to keep (8, .) sublane
    # tiling intact at both resolutions.
    assert W % 16 == 0 and H % 2 == 0, "TODO(synk): generalize odd/narrow widths"

    out_c = params["wx"].shape[1]
    D = params["wd"].shape[1]
    n_heads = out_c + D + 1
    assert n_heads <= _NHP

    r8 = lambda n: -(-n // 8) * 8

    # Pack the three head weights/biases into one lane-dense matrix, split by
    # input branch (x0 channels vs upsampled-x1 channels).
    w_all = jnp.concatenate([params["wx"], params["wd"], params["wo"]], axis=1)
    w_all = jnp.pad(w_all, ((0, 0), (0, _NHP - n_heads)))
    b_all = jnp.concatenate([params["bx"], params["bd"], params["bo"]], axis=1)
    b_all = jnp.pad(b_all, ((0, 0), (0, _NHP - n_heads)))
    w0 = w_all[:C1]          # (C1, _NHP)
    w1 = w_all[C1:]          # (C2, _NHP)

    vmem_limit, tile_budget = _vmem_limits()
    out_rows_padded = r8(out_c) + r8(D) + r8(1)
    th = _pick_row_tile(H, W, C1, C2, out_rows_padded, tile_budget)
    hh = th // 2

    # Flatten spatial dims (free metadata reshape): channels stay on sublanes,
    # pixels go onto lanes -> lane-dense DMA in and out of the kernel.
    x0f = x0.reshape(BN, C1, H * W)
    x1f = x1.reshape(BN, C2, Hh * Wh)

    def kernel(x0_ref, x1_ref, w0_ref, w1_ref, b_ref, xo_ref, do_ref, oo_ref):
        f0 = x0_ref[0]                          # (C1, th*W)  channels on sublanes
        f1 = x1_ref[0]                          # (C2, hh*Wh)

        # 1x1 convs as MXU matmuls contracting the channel (sublane) dim; the
        # concat is realized by summing the two split-weight products, and the
        # low-res product stays at LOW resolution (4x fewer pixels).
        cdims = (((0,), (0,)), ((), ()))
        y0 = lax.dot_general(f0, w0_ref[...], cdims,
                             preferred_element_type=jnp.float32)   # (th*W, NHP)
        y1 = lax.dot_general(f1, w1_ref[...], cdims,
                             preferred_element_type=jnp.float32)   # (hh*Wh, NHP)

        # Nearest 2x upsample of the low-res branch (1x1 conv commutes with
        # nearest upsampling): column repeat at low row count, row duplication
        # folded into a broadcast-add against y0 viewed as (hh, 2, W, NHP).
        y1 = jnp.repeat(y1.reshape(hh, Wh, _NHP), 2, axis=1)        # (hh, W, NHP)
        y = y0.reshape(hh, 2, W, _NHP) + y1[:, None, :, :] + b_ref[...]
        y = y.reshape(th * W, _NHP)

        # NCHW-ify once: heads to sublanes, pixels to lanes (XLU transpose).
        yt = jnp.transpose(y, (1, 0))                               # (NHP, th*W)

        # Per-head epilogue on un-padded sublane slices.
        xo_ref[0] = jnp.maximum(yt[:out_c], 0.0)
        dl = yt[out_c:out_c + D]
        e = jnp.exp(dl - jnp.max(dl, axis=0, keepdims=True))
        do_ref[0] = e / jnp.sum(e, axis=0, keepdims=True)
        oo_ref[0] = jax.nn.sigmoid(yt[out_c + D:out_c + D + 1])

    x_flat, d_flat, o_flat = pl.pallas_call(
        kernel,
        out_shape=(
            jax.ShapeDtypeStruct((BN, out_c, H * W), jnp.float32),
            jax.ShapeDtypeStruct((BN, D, H * W), jnp.float32),
            jax.ShapeDtypeStruct((BN, 1, H * W), jnp.float32),
        ),
        grid_spec=pltpu.PrefetchScalarGridSpec(
            num_scalar_prefetch=0,
            grid=(BN, H // th),
            in_specs=[
                pl.BlockSpec((1, C1, th * W), lambda b, i: (b, 0, i)),
                pl.BlockSpec((1, C2, hh * Wh), lambda b, i: (b, 0, i)),
                pl.BlockSpec((C1, _NHP), lambda b, i: (0, 0)),
                pl.BlockSpec((C2, _NHP), lambda b, i: (0, 0)),
                pl.BlockSpec((1, _NHP), lambda b, i: (0, 0)),
            ],
            out_specs=[
                pl.BlockSpec((1, out_c, th * W), lambda b, i: (b, 0, i)),
                pl.BlockSpec((1, D, th * W), lambda b, i: (b, 0, i)),
                pl.BlockSpec((1, 1, th * W), lambda b, i: (b, 0, i)),
            ],
        ),
        compiler_params=pltpu.CompilerParams(
            dimension_semantics=("parallel", "parallel"),
            vmem_limit_bytes=vmem_limit,
        ),
    )(x0f, x1f, w0, w1, b_all)

    return x_flat, d_flat, o_flat


# ---------------------------------------------------------------------------
# AGPNeck.forward (PyTorch NCHW contract)
# ---------------------------------------------------------------------------
def agp_neck_forward(xs, params, pseudo_depth=None, list_output=False):
    # TODO(synk): pseudo_depth is threaded to prepare_c_layer in the reference;
    # this synthetic head ignores it (None path).
    del pseudo_depth

    # if x[0].ndim == 5: flatten (B, N) -> BN, as in the torch module.
    xs = [y.reshape((-1,) + y.shape[2:]) if y.ndim == 5 else y for y in xs]
    x0, x1 = xs[0], xs[1]                 # NCHW, consumed as-is (no transposes)
    BN, _, H, W = x0.shape

    x_f, d_f, o_f = agp_neck_fused(x0, x1, params)

    # Only free metadata reshapes remain outside the kernel.
    x = x_f.reshape(BN, -1, H, W)
    depth = d_f.reshape(BN, -1, H, W)
    opacity = o_f.reshape(BN, -1, H, W)

    assert x.shape[1] == params["wx"].shape[1]
    if list_output:
        x = [x]
    return x, depth, opacity


# ---------------------------------------------------------------------------
# Pure-JAX reference for verification (unfused, explicit concat)
# ---------------------------------------------------------------------------
def _reference(xs, params):
    xs = [y.reshape((-1,) + y.shape[2:]) for y in xs]
    x0 = jnp.transpose(xs[0], (0, 2, 3, 1))
    x1 = jnp.transpose(xs[1], (0, 2, 3, 1))
    up = jnp.repeat(jnp.repeat(x1, 2, axis=1), 2, axis=2)
    feat = jnp.concatenate([x0, up], axis=-1)
    f = feat.reshape(-1, feat.shape[-1])
    x = jnp.maximum(f @ params["wx"] + params["bx"], 0.0)
    d = jax.nn.softmax(f @ params["wd"] + params["bd"], axis=-1)
    o = jax.nn.sigmoid(f @ params["wo"] + params["bo"])
    BN, H, W, _ = feat.shape
    to_nchw = lambda a: jnp.transpose(a.reshape(BN, H, W, -1), (0, 3, 1, 2))
    return to_nchw(x), to_nchw(d), to_nchw(o)


if __name__ == "__main__":
    B, N = 2, 2          # batch, num cameras  -> BN = 4
    C1, C2 = 8, 8        # channels of the two backbone outputs
    H, W = 16, 16        # full resolution (second input at H/2, W/2)
    OUT_C = 32           # prepare_c_layer.out_c
    DBINS = 16           # depth bins

    key = jax.random.PRNGKey(0)
    k0, k1, kwx, kbx, kwd, kbd, kwo, kbo = jax.random.split(key, 8)

    x_hi = jax.random.normal(k0, (B, N, C1, H, W), dtype=jnp.float32)
    x_lo = jax.random.normal(k1, (B, N, C2, H // 2, W // 2), dtype=jnp.float32)

    Ctot = C1 + C2
    params = {
        "wx": 0.1 * jax.random.normal(kwx, (Ctot, OUT_C), dtype=jnp.float32),
        "bx": 0.1 * jax.random.normal(kbx, (1, OUT_C), dtype=jnp.float32),
        "wd": 0.1 * jax.random.normal(kwd, (Ctot, DBINS), dtype=jnp.float32),
        "bd": 0.1 * jax.random.normal(kbd, (1, DBINS), dtype=jnp.float32),
        "wo": 0.1 * jax.random.normal(kwo, (Ctot, 1), dtype=jnp.float32),
        "bo": 0.1 * jax.random.normal(kbo, (1, 1), dtype=jnp.float32),
    }

    x_out, depth, opacity = agp_neck_forward([x_hi, x_lo], params)
    jax.block_until_ready((x_out, depth, opacity))

    assert x_out.shape == (B * N, OUT_C, H, W)
    assert depth.shape == (B * N, DBINS, H, W)
    assert opacity.shape == (B * N, 1, H, W)

    x_ref, d_ref, o_ref = _reference([x_hi, x_lo], params)
    np.testing.assert_allclose(np.asarray(x_out), np.asarray(x_ref), rtol=1e-5, atol=1e-5)
    np.testing.assert_allclose(np.asarray(depth), np.asarray(d_ref), rtol=1e-5, atol=1e-5)
    np.testing.assert_allclose(np.asarray(opacity), np.asarray(o_ref), rtol=1e-5, atol=1e-5)

    print("KERNEL_OK")
</pallas_src>

<mosaic_0001>
module attributes {stable_mosaic.version = 11 : i64} {
  func.func @kernel(%arg0: i32, %arg1: i32, %arg2: memref<1x8x256xf32, #tpu.memory_space<vmem>>, %arg3: memref<1x8x64xf32, #tpu.memory_space<vmem>>, %arg4: memref<8x128xf32, #tpu.memory_space<vmem>>, %arg5: memref<8x128xf32, #tpu.memory_space<vmem>>, %arg6: memref<1x128xf32, #tpu.memory_space<vmem>>, %arg7: memref<1x32x256xf32, #tpu.memory_space<vmem>>, %arg8: memref<1x16x256xf32, #tpu.memory_space<vmem>>, %arg9: memref<1x1x256xf32, #tpu.memory_space<vmem>>) attributes {dimension_semantics = [#tpu.dimension_semantics<parallel>, #tpu.dimension_semantics<parallel>], iteration_bounds = array<i64: 4, 1>, scalar_prefetch = 0 : i64, scratch_operands = 0 : i64, tpu.core_type = #tpu.core_type<tc>, window_params = [{transform_indices = @transform_0, window_bounds = array<i64: 1, 8, 256>}, {transform_indices = @transform_1, window_bounds = array<i64: 1, 8, 64>}, {pipeline_mode = #tpu.pipeline_mode<synchronous>, transform_indices = @transform_2, window_bounds = array<i64: 8, 128>}, {pipeline_mode = #tpu.pipeline_mode<synchronous>, transform_indices = @transform_3, window_bounds = array<i64: 8, 128>}, {pipeline_mode = #tpu.pipeline_mode<synchronous>, transform_indices = @transform_4, window_bounds = array<i64: 1, 128>}, {transform_indices = @transform_5, window_bounds = array<i64: 1, 32, 256>}, {transform_indices = @transform_6, window_bounds = array<i64: 1, 16, 256>}, {transform_indices = @transform_7, window_bounds = array<i64: 1, 1, 256>}]} {
    %c0 = arith.constant 0 : index
    %c0_0 = arith.constant 0 : index
    %c0_1 = arith.constant 0 : index
    %0 = vector.load %arg2[%c0, %c0_0, %c0_1] : memref<1x8x256xf32, #tpu.memory_space<vmem>>, vector<1x8x256xf32>
    %1 = vector.shape_cast %0 : vector<1x8x256xf32> to vector<8x256xf32>
    %c0_2 = arith.constant 0 : index
    %c0_3 = arith.constant 0 : index
    %c0_4 = arith.constant 0 : index
    %2 = vector.load %arg3[%c0_2, %c0_3, %c0_4] : memref<1x8x64xf32, #tpu.memory_space<vmem>>, vector<1x8x64xf32>
    %3 = vector.shape_cast %2 : vector<1x8x64xf32> to vector<8x64xf32>
    %c0_5 = arith.constant 0 : index
    %c0_6 = arith.constant 0 : index
    %4 = vector.load %arg4[%c0_5, %c0_6] : memref<8x128xf32, #tpu.memory_space<vmem>>, vector<8x128xf32>
    %cst = arith.constant dense<0.000000e+00> : vector<256x128xf32>
    %5 = tpu.matmul %1, %4, %cst {dimension_numbers = #tpu.dot_dimension_numbers<[0], [0], [1], [1], [0, 1, 1, 1], [], []>} : vector<8x256xf32>, vector<8x128xf32>, vector<256x128xf32> -> vector<256x128xf32>
    %c0_7 = arith.constant 0 : index
    %c0_8 = arith.constant 0 : index
    %6 = vector.load %arg5[%c0_7, %c0_8] : memref<8x128xf32, #tpu.memory_space<vmem>>, vector<8x128xf32>
    %cst_9 = arith.constant dense<0.000000e+00> : vector<64x128xf32>
    %7 = tpu.matmul %3, %6, %cst_9 {dimension_numbers = #tpu.dot_dimension_numbers<[0], [0], [1], [1], [0, 1, 1, 1], [], []>} : vector<8x64xf32>, vector<8x128xf32>, vector<64x128xf32> -> vector<64x128xf32>
    %8 = vector.shape_cast %7 : vector<64x128xf32> to vector<8x8x128xf32>
    %9 = vector.shape_cast %8 : vector<8x8x128xf32> to vector<8x8x1x128xf32>
    %10 = vector.broadcast %9 : vector<8x8x1x128xf32> to vector<8x8x2x128xf32>
    %11 = vector.shape_cast %10 : vector<8x8x2x128xf32> to vector<8x16x128xf32>
    %12 = vector.shape_cast %5 : vector<256x128xf32> to vector<8x2x16x128xf32>
    %13 = vector.shape_cast %11 : vector<8x16x128xf32> to vector<8x1x16x128xf32>
    %14 = vector.broadcast %13 : vector<8x1x16x128xf32> to vector<8x2x16x128xf32>
    %15 = arith.addf %12, %14 : vector<8x2x16x128xf32>
    %c0_10 = arith.constant 0 : index
    %c0_11 = arith.constant 0 : index
    %16 = vector.load %arg6[%c0_10, %c0_11] : memref<1x128xf32, #tpu.memory_space<vmem>>, vector<1x128xf32>
    %17 = vector.shape_cast %16 : vector<1x128xf32> to vector<1x1x1x128xf32>
    %18 = vector.broadcast %17 : vector<1x1x1x128xf32> to vector<8x2x16x128xf32>
    %19 = arith.addf %15, %18 : vector<8x2x16x128xf32>
    %20 = vector.shape_cast %19 : vector<8x2x16x128xf32> to vector<256x128xf32>
    %21 = tpu.transpose %20, [1, 0] : vector<256x128xf32> -> vector<128x256xf32>
    %22 = vector.extract_strided_slice %21 {offsets = [0, 0], sizes = [32, 256], strides = [1, 1]} : vector<128x256xf32> to vector<32x256xf32>
    %cst_12 = arith.constant 0.000000e+00 : f32
    %23 = vector.broadcast %cst_12 : f32 to vector<32x256xf32>
    %24 = arith.maximumf %22, %23 : vector<32x256xf32>
    %c0_13 = arith.constant 0 : index
    %c0_14 = arith.constant 0 : index
    %c0_15 = arith.constant 0 : index
    %25 = vector.load %arg7[%c0_13, %c0_14, %c0_15] : memref<1x32x256xf32, #tpu.memory_space<vmem>>, vector<1x32x256xf32>
    %26 = vector.shape_cast %25 : vector<1x32x256xf32> to vector<32x256xf32>
    %27 = vector.shape_cast %24 : vector<32x256xf32> to vector<1x32x256xf32>
    tpu.vector_store %arg7[%c0_13, %c0_14, %c0_15], %27 {strides = array<i32>} : memref<1x32x256xf32, #tpu.memory_space<vmem>>, vector<1x32x256xf32>,
    %28 = vector.extract_strided_slice %21 {offsets = [32, 0], sizes = [16, 256], strides = [1, 1]} : vector<128x256xf32> to vector<16x256xf32>
    %cst_16 = arith.constant dense<0xFF800000> : vector<256xf32>
    %29 = vector.multi_reduction <maximumf>, %28, %cst_16 [0] : vector<16x256xf32> to vector<256xf32>
    %30 = vector.shape_cast %29 : vector<256xf32> to vector<1x256xf32>
    %31 = vector.broadcast %30 : vector<1x256xf32> to vector<16x256xf32>
    %32 = arith.subf %28, %31 : vector<16x256xf32>
    %33 = math.exp %32 : vector<16x256xf32>
    %cst_17 = arith.constant dense<0.000000e+00> : vector<256xf32>
    %34 = vector.multi_reduction <add>, %33, %cst_17 [0] : vector<16x256xf32> to vector<256xf32>
    %35 = vector.shape_cast %34 : vector<256xf32> to vector<1x256xf32>
    %36 = vector.broadcast %35 : vector<1x256xf32> to vector<16x256xf32>
    %37 = arith.divf %33, %36 : vector<16x256xf32>
    %c0_18 = arith.constant 0 : index
    %c0_19 = arith.constant 0 : index
    %c0_20 = arith.constant 0 : index
    %38 = vector.load %arg8[%c0_18, %c0_19, %c0_20] : memref<1x16x256xf32, #tpu.memory_space<vmem>>, vector<1x16x256xf32>
    %39 = vector.shape_cast %38 : vector<1x16x256xf32> to vector<16x256xf32>
    %40 = vector.shape_cast %37 : vector<16x256xf32> to vector<1x16x256xf32>
    tpu.vector_store %arg8[%c0_18, %c0_19, %c0_20], %40 {strides = array<i32>} : memref<1x16x256xf32, #tpu.memory_space<vmem>>, vector<1x16x256xf32>,
    %41 = vector.extract_strided_slice %21 {offsets = [48, 0], sizes = [1, 256], strides = [1, 1]} : vector<128x256xf32> to vector<1x256xf32>
    %42 = arith.negf %41 : vector<1x256xf32>
    %43 = math.exp %42 : vector<1x256xf32>
    %cst_21 = arith.constant 1.000000e+00 : f32
    %44 = vector.broadcast %cst_21 : f32 to vector<1x256xf32>
    %45 = arith.addf %44, %43 : vector<1x256xf32>
    %46 = arith.divf %44, %45 : vector<1x256xf32>
    %c0_22 = arith.constant 0 : index
    %c0_23 = arith.constant 0 : index
    %c0_24 = arith.constant 0 : index
    %47 = vector.load %arg9[%c0_22, %c0_23, %c0_24] : memref<1x1x256xf32, #tpu.memory_space<vmem>>, vector<1x1x256xf32>
    %48 = vector.shape_cast %47 : vector<1x1x256xf32> to vector<1x256xf32>
    %49 = vector.shape_cast %46 : vector<1x256xf32> to vector<1x1x256xf32>
    tpu.vector_store %arg9[%c0_22, %c0_23, %c0_24], %49 {strides = array<i32>} : memref<1x1x256xf32, #tpu.memory_space<vmem>>, vector<1x1x256xf32>,
    return
  }
  func.func @transform_0(%arg0: i32, %arg1: i32) -> (i32, i32, i32) {
    %c0_i32 = arith.constant 0 : i32
    %c0_i32_0 = arith.constant 0 : i32
    return %arg0, %c0_i32, %arg1 : i32, i32, i32
  }
  func.func @transform_1(%arg0: i32, %arg1: i32) -> (i32, i32, i32) {
    %c0_i32 = arith.constant 0 : i32
    %c0_i32_0 = arith.constant 0 : i32
    return %arg0, %c0_i32, %arg1 : i32, i32, i32
  }
  func.func @transform_2(%arg0: i32, %arg1: i32) -> (i32, i32) {
    %c0_i32 = arith.constant 0 : i32
    %c0_i32_0 = arith.constant 0 : i32
    %c0_i32_1 = arith.constant 0 : i32
    return %c0_i32, %c0_i32_0 : i32, i32
  }
  func.func @transform_3(%arg0: i32, %arg1: i32) -> (i32, i32) {
    %c0_i32 = arith.constant 0 : i32
    %c0_i32_0 = arith.constant 0 : i32
    %c0_i32_1 = arith.constant 0 : i32
    return %c0_i32, %c0_i32_0 : i32, i32
  }
  func.func @transform_4(%arg0: i32, %arg1: i32) -> (i32, i32) {
    %c0_i32 = arith.constant 0 : i32
    %c0_i32_0 = arith.constant 0 : i32
    %c0_i32_1 = arith.constant 0 : i32
    return %c0_i32, %c0_i32_0 : i32, i32
  }
  func.func @transform_5(%arg0: i32, %arg1: i32) -> (i32, i32, i32) {
    %c0_i32 = arith.constant 0 : i32
    %c0_i32_0 = arith.constant 0 : i32
    return %arg0, %c0_i32, %arg1 : i32, i32, i32
  }
  func.func @transform_6(%arg0: i32, %arg1: i32) -> (i32, i32, i32) {
    %c0_i32 = arith.constant 0 : i32
    %c0_i32_0 = arith.constant 0 : i32
    return %arg0, %c0_i32, %arg1 : i32, i32, i32
  }
  func.func @transform_7(%arg0: i32, %arg1: i32) -> (i32, i32, i32) {
    %c0_i32 = arith.constant 0 : i32
    %c0_i32_0 = arith.constant 0 : i32
    return %arg0, %c0_i32, %arg1 : i32, i32, i32
  }
}

</mosaic_0001>

<llo_original>
// kernel: tpu_custom_call.1
$region0: #{tpu_custom_call.1}
  #allocation0 [shape = 'u32[]', space=smem, size = 0x4, offset = 0x4, fixed_abs, tag = 'smem constant byte address 0x4 - core index']
  #allocation1 [shape = 'u32[144,128]{1,0:T(1,128)}', space=vmem, size = 0x12000, scoped, tag = 'internal scratch']
  %s0 = inlined_call_operand.hbm [shape: f32[4,8,256], index: 0, kind: input, shape index: {}]
  %s1 = inlined_call_operand.hbm [shape: f32[4,8,64], index: 1, kind: input, shape index: {}]
  %s2 = inlined_call_operand.hbm [shape: f32[8,128], index: 2, kind: input, shape index: {}]
  %s3 = inlined_call_operand.vmem [shape: f32[8,128], index: 3, kind: input, shape index: {}]
  %s4 = inlined_call_operand.vmem [shape: f32[1,128], index: 4, kind: input, shape index: {}]
  %s5 = inlined_call_operand.hbm [shape: f32[4,32,256], index: 5, kind: output, shape index: {0}]
  %s6 = inlined_call_operand.hbm [shape: f32[4,16,256], index: 6, kind: output, shape index: {1}]
  %s7 = inlined_call_operand.hbm [shape: f32[4,1,256], index: 7, kind: output, shape index: {2}]
  %8 = xla_tuple %s5, %s6, %s7
  %s9 = sld [smem:[#allocation0]]
  $region81: #{tpu_custom_call.1} parent=0
    _
  %s11 = ssub.s32 1, %s9
  %s12 = scalar_select 0, %s11, %s9
  $region1: #{tpu_custom_call.1} parent=0
    #allocation2 [shape = 'u8[16384]{0}', space=vmem, size = 0x4000, scoped, tag = 'input window, operand 0']
    #allocation3 [shape = 's32[2]{0}', space=sflag, size = 0x8, scoped, tag = 'scoped memory for tpu_custom_call.1']
    #allocation4 [shape = 's32[2]{0}', space=sflag, size = 0x8, scoped, tag = 'scoped memory for tpu_custom_call.1']
    #allocation5 [shape = 'u8[8192]{0}', space=vmem, size = 0x2000, scoped, tag = 'input window, operand 1']
    #allocation6 [shape = 's32[2]{0}', space=sflag, size = 0x8, scoped, tag = 'scoped memory for tpu_custom_call.1']
    #allocation7 [shape = 'u8[4096]{0}', space=vmem, size = 0x1000, scoped, tag = 'input window, operand 2, single buffered']
    #allocation8 [shape = 'u8[65536]{0}', space=vmem, size = 0x10000, scoped, tag = 'output window, operand 0']
    #allocation9 [shape = 'u8[32768]{0}', space=vmem, size = 0x8000, scoped, tag = 'output window, operand 1']
    #allocation10 [shape = 's32[2]{0}', space=sflag, size = 0x8, scoped, tag = 'scoped memory for tpu_custom_call.1']
    #allocation11 [shape = 'u8[2048]{0}', space=vmem, size = 0x800, scoped, tag = 'output window, operand 2']
    %13 = vsyncpa [#allocation3], 0
    %s14 = scalar_lea.sflag [#allocation3], 1
    %15 = vsyncpa %s14, 0
    %16 = vsyncpa [#allocation6], 0
    %s17 = scalar_lea.sflag [#allocation6], 1
    %18 = vsyncpa %s17, 0
    %19 = vsyncpa [#allocation4], 0
    %s20 = scalar_lea.sflag [#allocation4], 1
    %21 = vsyncpa %s20, 0
    %22 = vsyncpa [#allocation10], 0
    %s23 = scalar_lea.sflag [#allocation10], 1
    %24 = vsyncpa %s23, 0
    loop: start=0, step=1, limit=6
    $region2: #{tpu_custom_call.1} parent=1 // loop_pre_header
      _
    $region3: #{tpu_custom_call.1} parent=1 // loop_header
      %s26 = sphi 0, %s30
      %p27 = scmp.ge.s32.totalorder %s26, 6
      %s33 = sphi 0, %s45
      %s34 = sphi 0, %s41
      %s35 = sphi 0, %s33
      %s36 = sphi 0, %s34
      %s37 = sphi 0, %s35
      %s38 = sphi 0, %s36
      %s50 = sphi 0, %s52
      %s53 = sphi 0, %s50
      %s54 = sphi 0, %s53
      %s70 = sphi 0, %s54
      %s78 = sphi 0, %s80
      %s81 = sphi 0, %s78
      %s82 = sphi 0, %s81
      %s98 = sphi 0, %s82
      %s102 = sphi 0, %s102
      %s104 = sphi 0, %s102
      %s105 = sphi 0, %s104
      %s119 = sphi 0, %s105
      %s123 = sphi 0, %s123
      %s125 = sphi 0, %s123
      %s126 = sphi 0, %s125
      %s140 = sphi 0, %s126
      %s144 = sphi 0, %s144
      %s146 = sphi 0, %s144
      %s147 = sphi 0, %s146
      %s161 = sphi 0, %s147
      %s169 = sphi 0, %s171
      %s172 = sphi 0, %s169
      %s173 = sphi 0, %s172
      %s189 = sphi 0, %s173
      %s197 = sphi 0, %s199
      %s200 = sphi 0, %s197
      %s201 = sphi 0, %s200
      %s217 = sphi 0, %s201
      %s225 = sphi 0, %s227
      %s228 = sphi 0, %s225
      %s229 = sphi 0, %s228
      %s245 = sphi 0, %s229
    $region4: #{tpu_custom_call.1} parent=1 // loop_header_branch
      %29 = sbr.rel (%p27) target = $region8
    $region5: #{tpu_custom_call.1} parent=1 // loop_body
      %s31 = ssub.s32 %s26, 1
      %s32 = ssub.s32 %s26, 2
      %s39 = sadd.s32 1, %s34
      %p40 = scmp.ge.s32.totalorder %s39, 1
      %s41 = scalar_select %p40, 0, %s39
      %s42 = sadd.s32 1, %s33
      %s43 = scalar_select %p40, %s42, %s33
      %p44 = scmp.ge.s32.totalorder %s43, 4
      %s45 = scalar_select %p44, 0, %s43
      %s46 = ssub.s32 %s33, %s45
      %s47 = ssub.s32 %s34, %s41
      %s48 = sor.u32 %s46, %s47
      %p49 = scmp.eq.s32.totalorder %s48, 0
      %s51 = sadd.s32 %s50, 1
      %s52 = scalar_select %p49, %s50, %s51
      %p55 = pneg %p49
      %p56 = scmp.eq.s32.totalorder %s26, 3
      %p57 = por %p55, %p56
      %p58 = scmp.ne.s32.totalorder %s50, %s53
      %p59 = scmp.eq.s32.totalorder %s26, 0
      %p60 = por %p58, %p59
      %p61 = scmp.ne.s32.totalorder %s50, %s53
      %p62 = scmp.eq.s32.totalorder %s31, 3
      %p63 = por %p61, %p62
      %p64 = scmp.ne.s32.totalorder %s53, %s54
      %p65 = scmp.eq.s32.totalorder %s31, 0
      %p66 = por %p64, %p65
      %p67 = scmp.ne.s32.totalorder %s53, %s54
      %p68 = scmp.eq.s32.totalorder %s32, 3
      %p69 = por %p67, %p68
      %p71 = scmp.ne.s32.totalorder %s54, %s70
      %p72 = scmp.eq.s32.totalorder %s32, 0
      %p73 = por %p71, %p72
      %s74 = ssub.s32 %s33, %s45
      %s75 = ssub.s32 %s34, %s41
      %s76 = sor.u32 %s74, %s75
      %p77 = scmp.eq.s32.totalorder %s76, 0
      %s79 = sadd.s32 %s78, 1
      %s80 = scalar_select %p77, %s78, %s79
      %p83 = pneg %p77
      %p84 = scmp.eq.s32.totalorder %s26, 3
      %p85 = por %p83, %p84
      %p86 = scmp.ne.s32.totalorder %s78, %s81
      %p87 = scmp.eq.s32.totalorder %s26, 0
      %p88 = por %p86, %p87
      %p89 = scmp.ne.s32.totalorder %s78, %s81
      %p90 = scmp.eq.s32.totalorder %s31, 3
      %p91 = por %p89, %p90
      %p92 = scmp.ne.s32.totalorder %s81, %s82
      %p93 = scmp.eq.s32.totalorder %s31, 0
      %p94 = por %p92, %p93
      %p95 = scmp.ne.s32.totalorder %s81, %s82
      %p96 = scmp.eq.s32.totalorder %s32, 3
      %p97 = por %p95, %p96
      %p99 = scmp.ne.s32.totalorder %s82, %s98
      %p100 = scmp.eq.s32.totalorder %s32, 0
      %p101 = por %p99, %p100
      %s103 = sadd.s32 %s102, 1
      %p106 = scmp.eq.s32.totalorder %s26, 3
      %p107 = scmp.ne.s32.totalorder %s102, %s104
      %p108 = scmp.eq.s32.totalorder %s26, 0
      %p109 = por %p107, %p108
      %p110 = scmp.ne.s32.totalorder %s102, %s104
      %p111 = scmp.eq.s32.totalorder %s31, 3
      %p112 = por %p110, %p111
      %p113 = scmp.ne.s32.totalorder %s104, %s105
      %p114 = scmp.eq.s32.totalorder %s31, 0
      %p115 = por %p113, %p114
      %p116 = scmp.ne.s32.totalorder %s104, %s105
      %p117 = scmp.eq.s32.totalorder %s32, 3
      %p118 = por %p116, %p117
      %p120 = scmp.ne.s32.totalorder %s105, %s119
      %p121 = scmp.eq.s32.totalorder %s32, 0
      %p122 = por %p120, %p121
      %s124 = sadd.s32 %s123, 1
      %p127 = scmp.eq.s32.totalorder %s26, 3
      %p128 = scmp.ne.s32.totalorder %s123, %s125
      %p129 = scmp.eq.s32.totalorder %s26, 0
      %p130 = por %p128, %p129
      %p131 = scmp.ne.s32.totalorder %s123, %s125
      %p132 = scmp.eq.s32.totalorder %s31, 3
      %p133 = por %p131, %p132
      %p134 = scmp.ne.s32.totalorder %s125, %s126
      %p135 = scmp.eq.s32.totalorder %s31, 0
      %p136 = por %p134, %p135
      %p137 = scmp.ne.s32.totalorder %s125, %s126
      %p138 = scmp.eq.s32.totalorder %s32, 3
      %p139 = por %p137, %p138
      %p141 = scmp.ne.s32.totalorder %s126, %s140
      %p142 = scmp.eq.s32.totalorder %s32, 0
      %p143 = por %p141, %p142
      %s145 = sadd.s32 %s144, 1
      %p148 = scmp.eq.s32.totalorder %s26, 3
      %p149 = scmp.ne.s32.totalorder %s144, %s146
      %p150 = scmp.eq.s32.totalorder %s26, 0
      %p151 = por %p149, %p150
      %p152 = scmp.ne.s32.totalorder %s144, %s146
      %p153 = scmp.eq.s32.totalorder %s31, 3
      %p154 = por %p152, %p153
      %p155 = scmp.ne.s32.totalorder %s146, %s147
      %p156 = scmp.eq.s32.totalorder %s31, 0
      %p157 = por %p155, %p156
      %p158 = scmp.ne.s32.totalorder %s146, %s147
      %p159 = scmp.eq.s32.totalorder %s32, 3
      %p160 = por %p158, %p159
      %p162 = scmp.ne.s32.totalorder %s147, %s161
      %p163 = scmp.eq.s32.totalorder %s32, 0
      %p164 = por %p162, %p163
      %s165 = ssub.s32 %s33, %s45
      %s166 = ssub.s32 %s34, %s41
      %s167 = sor.u32 %s165, %s166
      %p168 = scmp.eq.s32.totalorder %s167, 0
      %s170 = sadd.s32 %s169, 1
      %s171 = scalar_select %p168, %s169, %s170
      %p174 = pneg %p168
      %p175 = scmp.eq.s32.totalorder %s26, 3
      %p176 = por %p174, %p175
      %p177 = scmp.ne.s32.totalorder %s169, %s172
      %p178 = scmp.eq.s32.totalorder %s26, 0
      %p179 = por %p177, %p178
      %p180 = scmp.ne.s32.totalorder %s169, %s172
      %p181 = scmp.eq.s32.totalorder %s31, 3
      %p182 = por %p180, %p181
      %p183 = scmp.ne.s32.totalorder %s172, %s173
      %p184 = scmp.eq.s32.totalorder %s31, 0
      %p185 = por %p183, %p184
      %p186 = scmp.ne.s32.totalorder %s172, %s173
      %p187 = scmp.eq.s32.totalorder %s32, 3
      %p188 = por %p186, %p187
      %p190 = scmp.ne.s32.totalorder %s173, %s189
      %p191 = scmp.eq.s32.totalorder %s32, 0
      %p192 = por %p190, %p191
      %s193 = ssub.s32 %s33, %s45
      %s194 = ssub.s32 %s34, %s41
      %s195 = sor.u32 %s193, %s194
      %p196 = scmp.eq.s32.totalorder %s195, 0
      %s198 = sadd.s32 %s197, 1
      %s199 = scalar_select %p196, %s197, %s198
      %p202 = pneg %p196
      %p203 = scmp.eq.s32.totalorder %s26, 3
      %p204 = por %p202, %p203
      %p205 = scmp.ne.s32.totalorder %s197, %s200
      %p206 = scmp.eq.s32.totalorder %s26, 0
      %p207 = por %p205, %p206
      %p208 = scmp.ne.s32.totalorder %s197, %s200
      %p209 = scmp.eq.s32.totalorder %s31, 3
      %p210 = por %p208, %p209
      %p211 = scmp.ne.s32.totalorder %s200, %s201
      %p212 = scmp.eq.s32.totalorder %s31, 0
      %p213 = por %p211, %p212
      %p214 = scmp.ne.s32.totalorder %s200, %s201
      %p215 = scmp.eq.s32.totalorder %s32, 3
      %p216 = por %p214, %p215
      %p218 = scmp.ne.s32.totalorder %s201, %s217
      %p219 = scmp.eq.s32.totalorder %s32, 0
      %p220 = por %p218, %p219
      %s221 = ssub.s32 %s33, %s45
      %s222 = ssub.s32 %s34, %s41
      %s223 = sor.u32 %s221, %s222
      %p224 = scmp.eq.s32.totalorder %s223, 0
      %s226 = sadd.s32 %s225, 1
      %s227 = scalar_select %p224, %s225, %s226
      %p230 = pneg %p224
      %p231 = scmp.eq.s32.totalorder %s26, 3
      %p232 = por %p230, %p231
      %p233 = scmp.ne.s32.totalorder %s225, %s228
      %p234 = scmp.eq.s32.totalorder %s26, 0
      %p235 = por %p233, %p234
      %p236 = scmp.ne.s32.totalorder %s225, %s228
      %p237 = scmp.eq.s32.totalorder %s31, 3
      %p238 = por %p236, %p237
      %p239 = scmp.ne.s32.totalorder %s228, %s229
      %p240 = scmp.eq.s32.totalorder %s31, 0
      %p241 = por %p239, %p240
      %p242 = scmp.ne.s32.totalorder %s228, %s229
      %p243 = scmp.eq.s32.totalorder %s32, 3
      %p244 = por %p242, %p243
      %p246 = scmp.ne.s32.totalorder %s229, %s245
      %p247 = scmp.eq.s32.totalorder %s32, 0
      %p248 = por %p246, %p247
      %p249 = scmp.le.s32.totalorder 1, %s26
      %p250 = scmp.lt.s32.totalorder %s26, 5
      %p251 = pnand %p249, %p250
      %p252 = pneg %p251
      // Predicated region
      $region9: #{tpu_custom_call.1} parent=5 // pred_check
        _
      $region10: #{tpu_custom_call.1} parent=5 // pred_check_branch
        %254 = sbr.rel (%p251) target = $region12
      $region11: #{tpu_custom_call.1} parent=5 // pred_region
        %s255 = ssub.s32 %s26, 1
        // Predicated region
        $region13: #{tpu_custom_call.1} parent=11 // pred_check
          %p256 = pneg %p115
        $region14: #{tpu_custom_call.1} parent=11 // pred_check_branch
          %258 = sbr.rel (%p256) target = $region16
        $region15: #{tpu_custom_call.1} parent=11 // pred_region
          %s260 = ssub.s32 128, 128
          %261 = vsyncadd [#allocation6], %s260
          %s263 = sshll.u32 [#allocation7], 4
          %s264 = int_to_ptr.vmem [resolvable:$true] %s263
          %266 = dma.hbm_to_vmem [thread:$0]  %s2, 128, %s264, [#allocation6]
        $region16: #{tpu_custom_call.1} parent=11 // pred_fallthru
          _
        // Predicated region
        $region17: #{tpu_custom_call.1} parent=11 // pred_check
          %p267 = pneg %p136
        $region18: #{tpu_custom_call.1} parent=11 // pred_check_branch
          %269 = sbr.rel (%p267) target = $region20
        $region19: #{tpu_custom_call.1} parent=11 // pred_region
          _
        $region20: #{tpu_custom_call.1} parent=11 // pred_fallthru
          _
        // Predicated region
        $region21: #{tpu_custom_call.1} parent=11 // pred_check
          %p270 = pneg %p157
        $region22: #{tpu_custom_call.1} parent=11 // pred_check_branch
          %272 = sbr.rel (%p270) target = $region24
        $region23: #{tpu_custom_call.1} parent=11 // pred_region
          _
        $region24: #{tpu_custom_call.1} parent=11 // pred_fallthru
          _
      $region12: #{tpu_custom_call.1} parent=5 // pred_fallthru
        _
      %p273 = scmp.lt.s32.totalorder %s26, 4
      // Predicated region
      $region25: #{tpu_custom_call.1} parent=5 // pred_check
        %p274 = pneg %p273
      $region26: #{tpu_custom_call.1} parent=5 // pred_check_branch
        %276 = sbr.rel (%p274) target = $region28
      $region27: #{tpu_custom_call.1} parent=5 // pred_region
        // Predicated region
        $region29: #{tpu_custom_call.1} parent=27 // pred_check
          %p277 = pneg %p60
        $region30: #{tpu_custom_call.1} parent=27 // pred_check_branch
          %279 = sbr.rel (%p277) target = $region32
        $region31: #{tpu_custom_call.1} parent=27 // pred_region
          %s280 = sand.u32 %s50, 1
          %s281 = scalar_lea.sflag [#allocation3], %s280
          %s282 = sand.u32 %s50, 1
          %s283 = smul.addr %s282, 16
          %s284 = scalar_lea.vmem [#allocation2], %s283
          %s285 = smul.u32 2, %s34
          %s287 = ssub.s32 256, 256
          %288 = vsyncadd %s281, %s287
          %s289 = smul.addr %s33, 2
          %s290 = sadd.s32 %s285, %s289
          %s291 = smul.addr %s290, 128
          %s292 = scalar_lea.hbm %s0, %s291
          %s294 = sshll.u32 %s284, 4
          %s295 = int_to_ptr.vmem [resolvable:$true] %s294
          %297 = dma.hbm_to_vmem [thread:$0]  %s292, 256, %s295, %s281
        $region32: #{tpu_custom_call.1} parent=27 // pred_fallthru
          _
        // Predicated region
        $region33: #{tpu_custom_call.1} parent=27 // pred_check
          %p298 = pneg %p88
        $region34: #{tpu_custom_call.1} parent=27 // pred_check_branch
          %300 = sbr.rel (%p298) target = $region36
        $region35: #{tpu_custom_call.1} parent=27 // pred_region
          %s301 = sand.u32 %s26, 1
          %s302 = scalar_lea.sflag [#allocation6], %s301
          %s303 = sand.u32 %s78, 1
          %s304 = smul.addr %s303, 8
          %s305 = scalar_lea.vmem [#allocation5], %s304
          %s307 = ssub.s32 128, 128
          %308 = vsyncadd %s302, %s307
          %s309 = sadd.s32 %s34, %s33
          %s310 = smul.addr %s309, 128
          %s311 = scalar_lea.hbm %s1, %s310
          %s313 = sshll.u32 %s305, 4
          %s314 = int_to_ptr.vmem [resolvable:$true] %s313
          %316 = dma.hbm_to_vmem [thread:$0]  %s311, 128, %s314, %s302
        $region36: #{tpu_custom_call.1} parent=27 // pred_fallthru
          _
      $region28: #{tpu_custom_call.1} parent=5 // pred_fallthru
        _
      %p317 = scmp.le.s32.totalorder 1, %s26
      %p318 = scmp.lt.s32.totalorder %s26, 5
      %p319 = pnand %p317, %p318
      %p320 = pneg %p319
      // Predicated region
      $region37: #{tpu_custom_call.1} parent=5 // pred_check
        _
      $region38: #{tpu_custom_call.1} parent=5 // pred_check_branch
        %322 = sbr.rel (%p319) target = $region40
      $region39: #{tpu_custom_call.1} parent=5 // pred_region
        %s323 = ssub.s32 %s26, 1
        %s324 = sand.u32 %s53, 1
        %s325 = scalar_lea.sflag [#allocation3], %s324
        %s326 = sand.u32 %s53, 1
        %s327 = smul.addr %s326, 16
        %s328 = scalar_lea.vmem [#allocation2], %s327
        // Predicated region
        $region41: #{tpu_custom_call.1} parent=39 // pred_check
          %p329 = pneg %p66
        $region42: #{tpu_custom_call.1} parent=39 // pred_check_branch
          %331 = sbr.rel (%p329) target = $region44
        $region43: #{tpu_custom_call.1} parent=39 // pred_region
          %332 = dma.done %s325, 256
        $region44: #{tpu_custom_call.1} parent=39 // pred_fallthru
          _
        %s333 = sand.u32 %s31, 1
        %s334 = scalar_lea.sflag [#allocation6], %s333
        %s335 = sand.u32 %s81, 1
        %s336 = smul.addr %s335, 8
        %s337 = scalar_lea.vmem [#allocation5], %s336
        // Predicated region
        $region45: #{tpu_custom_call.1} parent=39 // pred_check
          %p338 = pneg %p94
        $region46: #{tpu_custom_call.1} parent=39 // pred_check_branch
          %340 = sbr.rel (%p338) target = $region48
        $region47: #{tpu_custom_call.1} parent=39 // pred_region
          %341 = dma.done %s334, 128
        $region48: #{tpu_custom_call.1} parent=39 // pred_fallthru
          _
        // Predicated region
        $region49: #{tpu_custom_call.1} parent=39 // pred_check
          %p342 = pneg %p115
        $region50: #{tpu_custom_call.1} parent=39 // pred_check_branch
          %344 = sbr.rel (%p342) target = $region52
        $region51: #{tpu_custom_call.1} parent=39 // pred_region
          %345 = dma.done [#allocation6], 128
        $region52: #{tpu_custom_call.1} parent=39 // pred_fallthru
          _
        %s346 = sand.u32 %s53, 1
        %s347 = scalar_lea.sflag [#allocation3], %s346
        %s348 = sand.u32 %s53, 1
        %s349 = smul.addr %s348, 16
        %s350 = scalar_lea.vmem [#allocation2], %s349
        %p351 = pneg %p66
        %p352 = pneg %p63
        %s353 = sand.u32 %s31, 1
        %s354 = scalar_lea.sflag [#allocation6], %s353
        %s355 = sand.u32 %s81, 1
        %s356 = smul.addr %s355, 8
        %s357 = scalar_lea.vmem [#allocation5], %s356
        %p358 = pneg %p94
        %p359 = pneg %p91
        %p360 = pneg %p115
        %p361 = pneg %p112
        %p362 = pneg %p136
        %p363 = pneg %p133
        %p364 = pneg %p157
        %p365 = pneg %p154
        %p366 = pneg %p185
        %p367 = pneg %p182
        %s368 = sand.u32 %s172, 1
        %s369 = scalar_lea.sflag [#allocation4], %s368
        %s370 = sand.u32 %s172, 1
        %s371 = smul.addr %s370, 64
        %s372 = scalar_lea.vmem [#allocation8], %s371
        %p373 = pneg %p213
        %p374 = pneg %p210
        %s375 = sand.u32 %s31, 1
        %s376 = scalar_lea.sflag [#allocation10], %s375
        %s377 = sand.u32 %s200, 1
        %s378 = smul.addr %s377, 32
        %s379 = scalar_lea.vmem [#allocation9], %s378
        %p380 = pneg %p241
        %p381 = pneg %p238
        %s382 = sand.u32 %s31, 1
        %s383 = scalar_lea.sflag [#allocation10], %s382
        %s384 = sand.u32 %s228, 1
        %s385 = smul.addr %s384, 2
        %s386 = scalar_lea.vmem [#allocation11], %s385
        %s387 = smul.u32 2, %s36
        %s388 = smul.u32 2, %s36
        %s389 = smul.u32 2, %s36
        %s390 = smul.u32 2, %s36
        %v391 = vld [vmem:[%s328] sm:$0xff]
        %v392 = vld [vmem:[%s328 + $0x8] sm:$0xff]
        %v393 = vld [vmem:[%s337] sm:$0xff]
        %v394 = vld [vmem:[#allocation7] sm:$0xff]
        %395 = vxpose.xlu0.b32.start [1/16] %v391, 128
        %396 = vxpose.xlu0.b32.cont [2/16] 0.0, 128
        %397 = vxpose.xlu0.b32.cont [3/16] 0.0, 128
        %398 = vxpose.xlu0.b32.cont [4/16] 0.0, 128
        %399 = vxpose.xlu0.b32.cont [5/16] 0.0, 128
        %400 = vxpose.xlu0.b32.cont [6/16] 0.0, 128
        %401 = vxpose.xlu0.b32.cont [7/16] 0.0, 128
        %402 = vxpose.xlu0.b32.cont [8/16] 0.0, 128
        %403 = vxpose.xlu0.b32.cont [9/16] 0.0, 128
        %404 = vxpose.xlu0.b32.cont [10/16] 0.0, 128
        %405 = vxpose.xlu0.b32.cont [11/16] 0.0, 128
        %406 = vxpose.xlu0.b32.cont [12/16] 0.0, 128
        %407 = vxpose.xlu0.b32.cont [13/16] 0.0, 128
        %408 = vxpose.xlu0.b32.cont [14/16] 0.0, 128
        %409 = vxpose.xlu0.b32.cont [15/16] 0.0, 128
        %410 = vxpose.xlu0.b32.end [16/16] 0.0, 128
        %v411 = vpop.trf.xlu0
        %v412 = vpop.trf.xlu0
        %v413 = vpop.trf.xlu0
        %v414 = vpop.trf.xlu0
        %v415 = vpop.trf.xlu0
        %v416 = vpop.trf.xlu0
        %v417 = vpop.trf.xlu0
        %v418 = vpop.trf.xlu0
        %v419 = vpop.trf.xlu0
        %v420 = vpop.trf.xlu0
        %v421 = vpop.trf.xlu0
        %v422 = vpop.trf.xlu0
        %v423 = vpop.trf.xlu0
        %v424 = vpop.trf.xlu0
        %v425 = vpop.trf.xlu0
        %v426 = vpop.trf.xlu0
        %427 = vxpose.xlu0.b32.start [1/16] %v392, 128
        %428 = vxpose.xlu0.b32.cont [2/16] 0.0, 128
        %429 = vxpose.xlu0.b32.cont [3/16] 0.0, 128
        %430 = vxpose.xlu0.b32.cont [4/16] 0.0, 128
        %431 = vxpose.xlu0.b32.cont [5/16] 0.0, 128
        %432 = vxpose.xlu0.b32.cont [6/16] 0.0, 128
        %433 = vxpose.xlu0.b32.cont [7/16] 0.0, 128
        %434 = vxpose.xlu0.b32.cont [8/16] 0.0, 128
        %435 = vxpose.xlu0.b32.cont [9/16] 0.0, 128
        %436 = vxpose.xlu0.b32.cont [10/16] 0.0, 128
        %437 = vxpose.xlu0.b32.cont [11/16] 0.0, 128
        %438 = vxpose.xlu0.b32.cont [12/16] 0.0, 128
        %439 = vxpose.xlu0.b32.cont [13/16] 0.0, 128
        %440 = vxpose.xlu0.b32.cont [14/16] 0.0, 128
        %441 = vxpose.xlu0.b32.cont [15/16] 0.0, 128
        %442 = vxpose.xlu0.b32.end [16/16] 0.0, 128
        %v443 = vpop.trf.xlu0
        %v444 = vpop.trf.xlu0
        %v445 = vpop.trf.xlu0
        %v446 = vpop.trf.xlu0
        %v447 = vpop.trf.xlu0
        %v448 = vpop.trf.xlu0
        %v449 = vpop.trf.xlu0
        %v450 = vpop.trf.xlu0
        %v451 = vpop.trf.xlu0
        %v452 = vpop.trf.xlu0
        %v453 = vpop.trf.xlu0
        %v454 = vpop.trf.xlu0
        %v455 = vpop.trf.xlu0
        %v456 = vpop.trf.xlu0
        %v457 = vpop.trf.xlu0
        %v458 = vpop.trf.xlu0
        %vm459 = vcmask 64512
        %v461 = vsel %vm459, %v411, 0
        %v464 = vsel %vm459, %v412, 0
        %v467 = vsel %vm459, %v413, 0
        %v470 = vsel %vm459, %v414, 0
        %v473 = vsel %vm459, %v415, 0
        %v476 = vsel %vm459, %v416, 0
        %v479 = vsel %vm459, %v417, 0
        %v482 = vsel %vm459, %v418, 0
        %v485 = vsel %vm459, %v419, 0
        %v488 = vsel %vm459, %v420, 0
        %v491 = vsel %vm459, %v421, 0
        %v494 = vsel %vm459, %v422, 0
        %v497 = vsel %vm459, %v423, 0
        %v500 = vsel %vm459, %v424, 0
        %v503 = vsel %vm459, %v425, 0
        %v506 = vsel %vm459, %v426, 0
        %v509 = vsel %vm459, %v443, 0
        %v512 = vsel %vm459, %v444, 0
        %v515 = vsel %vm459, %v445, 0
        %v518 = vsel %vm459, %v446, 0
        %v521 = vsel %vm459, %v447, 0
        %v524 = vsel %vm459, %v448, 0
        %v527 = vsel %vm459, %v449, 0
        %v530 = vsel %vm459, %v450, 0
        %v533 = vsel %vm459, %v451, 0
        %v536 = vsel %vm459, %v452, 0
        %v539 = vsel %vm459, %v453, 0
        %v542 = vsel %vm459, %v454, 0
        %v545 = vsel %vm459, %v455, 0
        %v548 = vsel %vm459, %v456, 0
        %v551 = vsel %vm459, %v457, 0
        %v554 = vsel %vm459, %v458, 0
        %556 = vmatprep.subr.mxu0 0.0
        %557 = vmatpush1.msra.mxu0 %v394
        %558 = vmatprep.subr.mxu0 0.0
        %559 = vmatpush1.msra.mxu0 0.0
        %560 = vmatprep.subr.mxu0 0.0
        %561 = vmatpush1.msra.mxu0 0.0
        %562 = vmatprep.subr.mxu0 0.0
        %563 = vmatpush1.msra.mxu0 0.0
        %564 = vmatprep.subr.mxu0 0.0
        %565 = vmatpush1.msra.mxu0 0.0
        %566 = vmatprep.subr.mxu0 0.0
        %567 = vmatpush1.msra.mxu0 0.0
        %568 = vmatprep.subr.mxu0 0.0
        %569 = vmatpush1.msra.mxu0 0.0
        %570 = vmatprep.subr.mxu0 0.0
        %571 = vmatpush1.msra.mxu0 0.0
        %572 = vmatprep.subr.mxu0 0.0
        %573 = vmatpush1.msra.mxu0 0.0
        %574 = vmatprep.subr.mxu0 0.0
        %575 = vmatpush1.msra.mxu0 0.0
        %576 = vmatprep.subr.mxu0 0.0
        %577 = vmatpush1.msra.mxu0 0.0
        %578 = vmatprep.subr.mxu0 0.0
        %579 = vmatpush1.msra.mxu0 0.0
        %580 = vmatprep.subr.mxu0 0.0
        %581 = vmatpush1.msra.mxu0 0.0
        %582 = vmatprep.subr.mxu0 0.0
        %583 = vmatpush1.msra.mxu0 0.0
        %584 = vmatprep.subr.mxu0 0.0
        %585 = vmatpush1.msra.mxu0 0.0
        %586 = vmatprep.subr.mxu0 0.0
        %587 = vmatpush1.msra.mxu0 0.0
        %588 = vmatprep.subr.mxu0 0.0
        %589 = vmatpush1.msra.mxu0 0.0
        %590 = vmatprep.subr.mxu0 0.0
        %591 = vmatpush1.msra.mxu0 0.0
        %592 = vmatprep.subr.mxu0 0.0
        %593 = vmatpush1.msra.mxu0 0.0
        %594 = vmatprep.subr.mxu0 0.0
        %595 = vmatpush1.msra.mxu0 0.0
        %596 = vmatprep.subr.mxu0 0.0
        %597 = vmatpush1.msra.mxu0 0.0
        %598 = vmatprep.subr.mxu0 0.0
        %599 = vmatpush1.msra.mxu0 0.0
        %600 = vmatprep.subr.mxu0 0.0
        %601 = vmatpush1.msra.mxu0 0.0
        %602 = vmatprep.subr.mxu0 0.0
        %603 = vmatpush1.msra.mxu0 0.0
        %604 = vmatprep.subr.mxu0 0.0
        %605 = vmatpush1.msra.mxu0 0.0
        %606 = vmatprep.subr.mxu0 0.0
        %607 = vmatpush1.msra.mxu0 0.0
        %608 = vmatprep.subr.mxu0 0.0
        %609 = vmatpush1.msra.mxu0 0.0
        %610 = vmatprep.subr.mxu0 0.0
        %611 = vmatpush1.msra.mxu0 0.0
        %612 = vmatprep.subr.mxu0 0.0
        %613 = vmatpush1.msra.mxu0 0.0
        %614 = vmatprep.subr.mxu0 0.0
        %615 = vmatpush1.msra.mxu0 0.0
        %616 = vmatprep.subr.mxu0 0.0
        %617 = vmatpush1.msra.mxu0 0.0
        %618 = vmatprep.subr.mxu0 0.0
        %619 = vmatpush1.msra.mxu0 0.0
        %620 = vmatprep.mubr.f32.mxu0 0.0
        %621 = vmatmul.mubr.f32.gmra.mrb[0].mxu0 %v461
        %v622 = vpop.f32.mrb[0].mxu0
        %v623 = vadd.f32 0.0, %v622
        %v624 = vpop.f32.mrb[0].mxu0
        %625 = vmatprep.mubr.f32.mxu0 0.0
        %626 = vmatmul.mubr.f32.gmra.mrb[0].mxu0 %v464
        %v627 = vpop.f32.mrb[0].mxu0
        %v628 = vadd.f32 0.0, %v627
        %v629 = vpop.f32.mrb[0].mxu0
        %630 = vmatprep.mubr.f32.mxu0 0.0
        %631 = vmatmul.mubr.f32.gmra.mrb[0].mxu0 %v467
        %v632 = vpop.f32.mrb[0].mxu0
        %v633 = vadd.f32 0.0, %v632
        %v634 = vpop.f32.mrb[0].mxu0
        %635 = vmatprep.mubr.f32.mxu0 0.0
        %636 = vmatmul.mubr.f32.gmra.mrb[0].mxu0 %v470
        %v637 = vpop.f32.mrb[0].mxu0
        %v638 = vadd.f32 0.0, %v637
        %v639 = vpop.f32.mrb[0].mxu0
        %640 = vmatprep.mubr.f32.mxu0 0.0
        %641 = vmatmul.mubr.f32.gmra.mrb[0].mxu0 %v473
        %v642 = vpop.f32.mrb[0].mxu0
        %v643 = vadd.f32 0.0, %v642
        %v644 = vpop.f32.mrb[0].mxu0
        %645 = vmatprep.mubr.f32.mxu0 0.0
        %646 = vmatmul.mubr.f32.gmra.mrb[0].mxu0 %v476
        %v647 = vpop.f32.mrb[0].mxu0
        %v648 = vadd.f32 0.0, %v647
        %v649 = vpop.f32.mrb[0].mxu0
        %650 = vmatprep.mubr.f32.mxu0 0.0
        %651 = vmatmul.mubr.f32.gmra.mrb[0].mxu0 %v479
        %v652 = vpop.f32.mrb[0].mxu0
        %v653 = vadd.f32 0.0, %v652
        %v654 = vpop.f32.mrb[0].mxu0
        %655 = vmatprep.mubr.f32.mxu0 0.0
        %656 = vmatmul.mubr.f32.gmra.mrb[0].mxu0 %v482
        %v657 = vpop.f32.mrb[0].mxu0
        %v658 = vadd.f32 0.0, %v657
        %v659 = vpop.f32.mrb[0].mxu0
        %660 = vmatprep.mubr.f32.mxu0 0.0
        %661 = vmatmul.mubr.f32.gmra.mrb[0].mxu0 %v485
        %v662 = vpop.f32.mrb[0].mxu0
        %v663 = vadd.f32 0.0, %v662
        %v664 = vpop.f32.mrb[0].mxu0
        %665 = vmatprep.mubr.f32.mxu0 0.0
        %666 = vmatmul.mubr.f32.gmra.mrb[0].mxu0 %v488
        %v667 = vpop.f32.mrb[0].mxu0
        %v668 = vadd.f32 0.0, %v667
        %v669 = vpop.f32.mrb[0].mxu0
        %670 = vmatprep.mubr.f32.mxu0 0.0
        %671 = vmatmul.mubr.f32.gmra.mrb[0].mxu0 %v491
        %v672 = vpop.f32.mrb[0].mxu0
        %v673 = vadd.f32 0.0, %v672
        %v674 = vpop.f32.mrb[0].mxu0
        %675 = vmatprep.mubr.f32.mxu0 0.0
        %676 = vmatmul.mubr.f32.gmra.mrb[0].mxu0 %v494
        %v677 = vpop.f32.mrb[0].mxu0
        %v678 = vadd.f32 0.0, %v677
        %v679 = vpop.f32.mrb[0].mxu0
        %680 = vmatprep.mubr.f32.mxu0 0.0
        %681 = vmatmul.mubr.f32.gmra.mrb[0].mxu0 %v497
        %v682 = vpop.f32.mrb[0].mxu0
        %v683 = vadd.f32 0.0, %v682
        %v684 = vpop.f32.mrb[0].mxu0
        %685 = vmatprep.mubr.f32.mxu0 0.0
        %686 = vmatmul.mubr.f32.gmra.mrb[0].mxu0 %v500
        %v687 = vpop.f32.mrb[0].mxu0
        %v688 = vadd.f32 0.0, %v687
        %v689 = vpop.f32.mrb[0].mxu0
        %690 = vmatprep.mubr.f32.mxu0 0.0
        %691 = vmatmul.mubr.f32.gmra.mrb[0].mxu0 %v503
        %v692 = vpop.f32.mrb[0].mxu0
        %v693 = vadd.f32 0.0, %v692
        %v694 = vpop.f32.mrb[0].mxu0
        %695 = vmatprep.mubr.f32.mxu0 0.0
        %696 = vmatmul.mubr.f32.gmra.mrb[0].mxu0 %v506
        %v697 = vpop.f32.mrb[0].mxu0
        %v698 = vadd.f32 0.0, %v697
        %v699 = vpop.f32.mrb[0].mxu0
        %700 = vmatprep.mubr.f32.mxu0 0.0
        %701 = vmatmul.mubr.f32.gmra.mrb[0].mxu0 %v509
        %v702 = vpop.f32.mrb[0].mxu0
        %v703 = vadd.f32 0.0, %v702
        %v704 = vpop.f32.mrb[0].mxu0
        %705 = vmatprep.mubr.f32.mxu0 0.0
        %706 = vmatmul.mubr.f32.gmra.mrb[0].mxu0 %v512
        %v707 = vpop.f32.mrb[0].mxu0
        %v708 = vadd.f32 0.0, %v707
        %v709 = vpop.f32.mrb[0].mxu0
        %710 = vmatprep.mubr.f32.mxu0 0.0
        %711 = vmatmul.mubr.f32.gmra.mrb[0].mxu0 %v515
        %v712 = vpop.f32.mrb[0].mxu0
        %v713 = vadd.f32 0.0, %v712
        %v714 = vpop.f32.mrb[0].mxu0
        %715 = vmatprep.mubr.f32.mxu0 0.0
        %716 = vmatmul.mubr.f32.gmra.mrb[0].mxu0 %v518
        %v717 = vpop.f32.mrb[0].mxu0
        %v718 = vadd.f32 0.0, %v717
        %v719 = vpop.f32.mrb[0].mxu0
        %720 = vmatprep.mubr.f32.mxu0 0.0
        %721 = vmatmul.mubr.f32.gmra.mrb[0].mxu0 %v521
        %v722 = vpop.f32.mrb[0].mxu0
        %v723 = vadd.f32 0.0, %v722
        %v724 = vpop.f32.mrb[0].mxu0
        %725 = vmatprep.mubr.f32.mxu0 0.0
        %726 = vmatmul.mubr.f32.gmra.mrb[0].mxu0 %v524
        %v727 = vpop.f32.mrb[0].mxu0
        %v728 = vadd.f32 0.0, %v727
        %v729 = vpop.f32.mrb[0].mxu0
        %730 = vmatprep.mubr.f32.mxu0 0.0
        %731 = vmatmul.mubr.f32.gmra.mrb[0].mxu0 %v527
        %v732 = vpop.f32.mrb[0].mxu0
        %v733 = vadd.f32 0.0, %v732
        %v734 = vpop.f32.mrb[0].mxu0
        %735 = vmatprep.mubr.f32.mxu0 0.0
        %736 = vmatmul.mubr.f32.gmra.mrb[0].mxu0 %v530
        %v737 = vpop.f32.mrb[0].mxu0
        %v738 = vadd.f32 0.0, %v737
        %v739 = vpop.f32.mrb[0].mxu0
        %740 = vmatprep.mubr.f32.mxu0 0.0
        %741 = vmatmul.mubr.f32.gmra.mrb[0].mxu0 %v533
        %v742 = vpop.f32.mrb[0].mxu0
        %v743 = vadd.f32 0.0, %v742
        %v744 = vpop.f32.mrb[0].mxu0
        %745 = vmatprep.mubr.f32.mxu0 0.0
        %746 = vmatmul.mubr.f32.gmra.mrb[0].mxu0 %v536
        %v747 = vpop.f32.mrb[0].mxu0
        %v748 = vadd.f32 0.0, %v747
        %v749 = vpop.f32.mrb[0].mxu0
        %750 = vmatprep.mubr.f32.mxu0 0.0
        %751 = vmatmul.mubr.f32.gmra.mrb[0].mxu0 %v539
        %v752 = vpop.f32.mrb[0].mxu0
        %v753 = vadd.f32 0.0, %v752
        %v754 = vpop.f32.mrb[0].mxu0
        %755 = vmatprep.mubr.f32.mxu0 0.0
        %756 = vmatmul.mubr.f32.gmra.mrb[0].mxu0 %v542
        %v757 = vpop.f32.mrb[0].mxu0
        %v758 = vadd.f32 0.0, %v757
        %v759 = vpop.f32.mrb[0].mxu0
        %760 = vmatprep.mubr.f32.mxu0 0.0
        %761 = vmatmul.mubr.f32.gmra.mrb[0].mxu0 %v545
        %v762 = vpop.f32.mrb[0].mxu0
        %v763 = vadd.f32 0.0, %v762
        %v764 = vpop.f32.mrb[0].mxu0
        %765 = vmatprep.mubr.f32.mxu0 0.0
        %766 = vmatmul.mubr.f32.gmra.mrb[0].mxu0 %v548
        %v767 = vpop.f32.mrb[0].mxu0
        %v768 = vadd.f32 0.0, %v767
        %v769 = vpop.f32.mrb[0].mxu0
        %770 = vmatprep.mubr.f32.mxu0 0.0
        %771 = vmatmul.mubr.f32.gmra.mrb[0].mxu0 %v551
        %v772 = vpop.f32.mrb[0].mxu0
        %v773 = vadd.f32 0.0, %v772
        %v774 = vpop.f32.mrb[0].mxu0
        %775 = vmatprep.mubr.f32.mxu0 0.0
        %776 = vmatmul.mubr.f32.gmra.mrb[0].mxu0 %v554
        %v777 = vpop.f32.mrb[0].mxu0
        %v778 = vadd.f32 0.0, %v777
        %v779 = vpop.f32.mrb[0].mxu0
        %780 = vdwg.mxu0
        %v781 = vld [vmem:[%s3] sm:$0xff]
        %782 = vxpose.xlu0.b32.start [1/16] %v393, 128
        %783 = vxpose.xlu0.b32.cont [2/16] 0.0, 128
        %784 = vxpose.xlu0.b32.cont [3/16] 0.0, 128
        %785 = vxpose.xlu0.b32.cont [4/16] 0.0, 128
        %786 = vxpose.xlu0.b32.cont [5/16] 0.0, 128
        %787 = vxpose.xlu0.b32.cont [6/16] 0.0, 128
        %788 = vxpose.xlu0.b32.cont [7/16] 0.0, 128
        %789 = vxpose.xlu0.b32.cont [8/16] 0.0, 128
        %790 = vxpose.xlu0.b32.cont [9/16] 0.0, 128
        %791 = vxpose.xlu0.b32.cont [10/16] 0.0, 128
        %792 = vxpose.xlu0.b32.cont [11/16] 0.0, 128
        %793 = vxpose.xlu0.b32.cont [12/16] 0.0, 128
        %794 = vxpose.xlu0.b32.cont [13/16] 0.0, 128
        %795 = vxpose.xlu0.b32.cont [14/16] 0.0, 128
        %796 = vxpose.xlu0.b32.cont [15/16] 0.0, 128
        %797 = vxpose.xlu0.b32.end [16/16] 0.0, 128
        %v798 = vpop.trf.xlu0
        %v799 = vpop.trf.xlu0
        %v800 = vpop.trf.xlu0
        %v801 = vpop.trf.xlu0
        %v802 = vpop.trf.xlu0
        %v803 = vpop.trf.xlu0
        %v804 = vpop.trf.xlu0
        %v805 = vpop.trf.xlu0
        %v806 = vpop.trf.xlu0
        %v807 = vpop.trf.xlu0
        %v808 = vpop.trf.xlu0
        %v809 = vpop.trf.xlu0
        %v810 = vpop.trf.xlu0
        %v811 = vpop.trf.xlu0
        %v812 = vpop.trf.xlu0
        %v813 = vpop.trf.xlu0
        %v815 = vsel %vm459, %v798, 0
        %v818 = vsel %vm459, %v799, 0
        %v821 = vsel %vm459, %v800, 0
        %v824 = vsel %vm459, %v801, 0
        %v827 = vsel %vm459, %v802, 0
        %v830 = vsel %vm459, %v803, 0
        %v833 = vsel %vm459, %v804, 0
        %v836 = vsel %vm459, %v805, 0
        %838 = vmatprep.subr.mxu0 0.0
        %839 = vmatpush1.msra.mxu0 %v781
        %840 = vmatprep.subr.mxu0 0.0
        %841 = vmatpush1.msra.mxu0 0.0
        %842 = vmatprep.subr.mxu0 0.0
        %843 = vmatpush1.msra.mxu0 0.0
        %844 = vmatprep.subr.mxu0 0.0
        %845 = vmatpush1.msra.mxu0 0.0
        %846 = vmatprep.subr.mxu0 0.0
        %847 = vmatpush1.msra.mxu0 0.0
        %848 = vmatprep.subr.mxu0 0.0
        %849 = vmatpush1.msra.mxu0 0.0
        %850 = vmatprep.subr.mxu0 0.0
        %851 = vmatpush1.msra.mxu0 0.0
        %852 = vmatprep.subr.mxu0 0.0
        %853 = vmatpush1.msra.mxu0 0.0
        %854 = vmatprep.subr.mxu0 0.0
        %855 = vmatpush1.msra.mxu0 0.0
        %856 = vmatprep.subr.mxu0 0.0
        %857 = vmatpush1.msra.mxu0 0.0
        %858 = vmatprep.subr.mxu0 0.0
        %859 = vmatpush1.msra.mxu0 0.0
        %860 = vmatprep.subr.mxu0 0.0
        %861 = vmatpush1.msra.mxu0 0.0
        %862 = vmatprep.subr.mxu0 0.0
        %863 = vmatpush1.msra.mxu0 0.0
        %864 = vmatprep.subr.mxu0 0.0
        %865 = vmatpush1.msra.mxu0 0.0
        %866 = vmatprep.subr.mxu0 0.0
        %867 = vmatpush1.msra.mxu0 0.0
        %868 = vmatprep.subr.mxu0 0.0
        %869 = vmatpush1.msra.mxu0 0.0
        %870 = vmatprep.subr.mxu0 0.0
        %871 = vmatpush1.msra.mxu0 0.0
        %872 = vmatprep.subr.mxu0 0.0
        %873 = vmatpush1.msra.mxu0 0.0
        %874 = vmatprep.subr.mxu0 0.0
        %875 = vmatpush1.msra.mxu0 0.0
        %876 = vmatprep.subr.mxu0 0.0
        %877 = vmatpush1.msra.mxu0 0.0
        %878 = vmatprep.subr.mxu0 0.0
        %879 = vmatpush1.msra.mxu0 0.0
        %880 = vmatprep.subr.mxu0 0.0
        %881 = vmatpush1.msra.mxu0 0.0
        %882 = vmatprep.subr.mxu0 0.0
        %883 = vmatpush1.msra.mxu0 0.0
        %884 = vmatprep.subr.mxu0 0.0
        %885 = vmatpush1.msra.mxu0 0.0
        %886 = vmatprep.subr.mxu0 0.0
        %887 = vmatpush1.msra.mxu0 0.0
        %888 = vmatprep.subr.mxu0 0.0
        %889 = vmatpush1.msra.mxu0 0.0
        %890 = vmatprep.subr.mxu0 0.0
        %891 = vmatpush1.msra.mxu0 0.0
        %892 = vmatprep.subr.mxu0 0.0
        %893 = vmatpush1.msra.mxu0 0.0
        %894 = vmatprep.subr.mxu0 0.0
        %895 = vmatpush1.msra.mxu0 0.0
        %896 = vmatprep.subr.mxu0 0.0
        %897 = vmatpush1.msra.mxu0 0.0
        %898 = vmatprep.subr.mxu0 0.0
        %899 = vmatpush1.msra.mxu0 0.0
        %900 = vmatprep.subr.mxu0 0.0
        %901 = vmatpush1.msra.mxu0 0.0
        %902 = vmatprep.mubr.f32.mxu0 0.0
        %903 = vmatmul.mubr.f32.gmra.mrb[0].mxu0 %v815
        %v904 = vpop.f32.mrb[0].mxu0
        %v905 = vadd.f32 0.0, %v904
        %v906 = vpop.f32.mrb[0].mxu0
        %907 = vmatprep.mubr.f32.mxu0 0.0
        %908 = vmatmul.mubr.f32.gmra.mrb[0].mxu0 %v818
        %v909 = vpop.f32.mrb[0].mxu0
        %v910 = vadd.f32 0.0, %v909
        %v911 = vpop.f32.mrb[0].mxu0
        %912 = vmatprep.mubr.f32.mxu0 0.0
        %913 = vmatmul.mubr.f32.gmra.mrb[0].mxu0 %v821
        %v914 = vpop.f32.mrb[0].mxu0
        %v915 = vadd.f32 0.0, %v914
        %v916 = vpop.f32.mrb[0].mxu0
        %917 = vmatprep.mubr.f32.mxu0 0.0
        %918 = vmatmul.mubr.f32.gmra.mrb[0].mxu0 %v824
        %v919 = vpop.f32.mrb[0].mxu0
        %v920 = vadd.f32 0.0, %v919
        %v921 = vpop.f32.mrb[0].mxu0
        %922 = vmatprep.mubr.f32.mxu0 0.0
        %923 = vmatmul.mubr.f32.gmra.mrb[0].mxu0 %v827
        %v924 = vpop.f32.mrb[0].mxu0
        %v925 = vadd.f32 0.0, %v924
        %v926 = vpop.f32.mrb[0].mxu0
        %927 = vmatprep.mubr.f32.mxu0 0.0
        %928 = vmatmul.mubr.f32.gmra.mrb[0].mxu0 %v830
        %v929 = vpop.f32.mrb[0].mxu0
        %v930 = vadd.f32 0.0, %v929
        %v931 = vpop.f32.mrb[0].mxu0
        %932 = vmatprep.mubr.f32.mxu0 0.0
        %933 = vmatmul.mubr.f32.gmra.mrb[0].mxu0 %v833
        %v934 = vpop.f32.mrb[0].mxu0
        %v935 = vadd.f32 0.0, %v934
        %v936 = vpop.f32.mrb[0].mxu0
        %937 = vmatprep.mubr.f32.mxu0 0.0
        %938 = vmatmul.mubr.f32.gmra.mrb[0].mxu0 %v836
        %v939 = vpop.f32.mrb[0].mxu0
        %v940 = vadd.f32 0.0, %v939
        %v941 = vpop.f32.mrb[0].mxu0
        %942 = vdwg.mxu0
        %v951 = vcombine.high %v905, %v905
        %v953 = vunpack.c.l.s4 1966171168
        %v954 = vunpack.c.0.s8 %v953
        %v955 = vlaneseq
        %v956 = vshrl.u32 %v955, 7
        %v957 = vsub.s32 %v954, %v956
        %v958 = vrot.slane %v905, %v957
        %v960 = vunpack.c.l.s4 1966171168
        %v961 = vunpack.c.0.s8 %v960
        %v962 = vlaneseq
        %v963 = vshrl.u32 %v962, 7
        %v964 = vsub.s32 %v961, %v963
        %v965 = vrot.slane %v951, %v964
        %v966 = vcombine.high %v958, %v958
        %v967 = vcombine.high %v965, %v965
        %v969 = vunpack.c.l.s4 1966171168
        %v970 = vunpack.c.0.s8 %v969
        %v971 = vlaneseq
        %v972 = vshrl.u32 %v971, 7
        %v973 = vsub.s32 %v970, %v972
        %v974 = vrot.slane %v958, %v973
        %v976 = vunpack.c.l.s4 1966171168
        %v977 = vunpack.c.0.s8 %v976
        %v978 = vlaneseq
        %v979 = vshrl.u32 %v978, 7
        %v980 = vsub.s32 %v977, %v979
        %v981 = vrot.slane %v965, %v980
        %v983 = vunpack.c.l.s4 1966171168
        %v984 = vunpack.c.0.s8 %v983
        %v985 = vlaneseq
        %v986 = vshrl.u32 %v985, 7
        %v987 = vsub.s32 %v984, %v986
        %v988 = vrot.slane %v966, %v987
        %v990 = vunpack.c.l.s4 1966171168
        %v991 = vunpack.c.0.s8 %v990
        %v992 = vlaneseq
        %v993 = vshrl.u32 %v992, 7
        %v994 = vsub.s32 %v991, %v993
        %v995 = vrot.slane %v967, %v994
        %v996 = vcombine.high %v974, %v974
        %v997 = vcombine.high %v981, %v981
        %v998 = vcombine.high %v988, %v988
        %v999 = vcombine.high %v995, %v995
        %v1000 = vcombine.high %v910, %v910
        %v1002 = vunpack.c.l.s4 1966171168
        %v1003 = vunpack.c.0.s8 %v1002
        %v1004 = vlaneseq
        %v1005 = vshrl.u32 %v1004, 7
        %v1006 = vsub.s32 %v1003, %v1005
        %v1007 = vrot.slane %v910, %v1006
        %v1009 = vunpack.c.l.s4 1966171168
        %v1010 = vunpack.c.0.s8 %v1009
        %v1011 = vlaneseq
        %v1012 = vshrl.u32 %v1011, 7
        %v1013 = vsub.s32 %v1010, %v1012
        %v1014 = vrot.slane %v1000, %v1013
        %v1015 = vcombine.high %v1007, %v1007
        %v1016 = vcombine.high %v1014, %v1014
        %v1018 = vunpack.c.l.s4 1966171168
        %v1019 = vunpack.c.0.s8 %v1018
        %v1020 = vlaneseq
        %v1021 = vshrl.u32 %v1020, 7
        %v1022 = vsub.s32 %v1019, %v1021
        %v1023 = vrot.slane %v1007, %v1022
        %v1025 = vunpack.c.l.s4 1966171168
        %v1026 = vunpack.c.0.s8 %v1025
        %v1027 = vlaneseq
        %v1028 = vshrl.u32 %v1027, 7
        %v1029 = vsub.s32 %v1026, %v1028
        %v1030 = vrot.slane %v1014, %v1029
        %v1032 = vunpack.c.l.s4 1966171168
        %v1033 = vunpack.c.0.s8 %v1032
        %v1034 = vlaneseq
        %v1035 = vshrl.u32 %v1034, 7
        %v1036 = vsub.s32 %v1033, %v1035
        %v1037 = vrot.slane %v1015, %v1036
        %v1039 = vunpack.c.l.s4 1966171168
        %v1040 = vunpack.c.0.s8 %v1039
        %v1041 = vlaneseq
        %v1042 = vshrl.u32 %v1041, 7
        %v1043 = vsub.s32 %v1040, %v1042
        %v1044 = vrot.slane %v1016, %v1043
        %v1045 = vcombine.high %v1023, %v1023
        %v1046 = vcombine.high %v1030, %v1030
        %v1047 = vcombine.high %v1037, %v1037
        %v1048 = vcombine.high %v1044, %v1044
        %v1049 = vcombine.high %v915, %v915
        %v1051 = vunpack.c.l.s4 1966171168
        %v1052 = vunpack.c.0.s8 %v1051
        %v1053 = vlaneseq
        %v1054 = vshrl.u32 %v1053, 7
        %v1055 = vsub.s32 %v1052, %v1054
        %v1056 = vrot.slane %v915, %v1055
        %v1058 = vunpack.c.l.s4 1966171168
        %v1059 = vunpack.c.0.s8 %v1058
        %v1060 = vlaneseq
        %v1061 = vshrl.u32 %v1060, 7
        %v1062 = vsub.s32 %v1059, %v1061
        %v1063 = vrot.slane %v1049, %v1062
        %v1064 = vcombine.high %v1056, %v1056
        %v1065 = vcombine.high %v1063, %v1063
        %v1067 = vunpack.c.l.s4 1966171168
        %v1068 = vunpack.c.0.s8 %v1067
        %v1069 = vlaneseq
        %v1070 = vshrl.u32 %v1069, 7
        %v1071 = vsub.s32 %v1068, %v1070
        %v1072 = vrot.slane %v1056, %v1071
        %v1074 = vunpack.c.l.s4 1966171168
        %v1075 = vunpack.c.0.s8 %v1074
        %v1076 = vlaneseq
        %v1077 = vshrl.u32 %v1076, 7
        %v1078 = vsub.s32 %v1075, %v1077
        %v1079 = vrot.slane %v1063, %v1078
        %v1081 = vunpack.c.l.s4 1966171168
        %v1082 = vunpack.c.0.s8 %v1081
        %v1083 = vlaneseq
        %v1084 = vshrl.u32 %v1083, 7
        %v1085 = vsub.s32 %v1082, %v1084
        %v1086 = vrot.slane %v1064, %v1085
        %v1088 = vunpack.c.l.s4 1966171168
        %v1089 = vunpack.c.0.s8 %v1088
        %v1090 = vlaneseq
        %v1091 = vshrl.u32 %v1090, 7
        %v1092 = vsub.s32 %v1089, %v1091
        %v1093 = vrot.slane %v1065, %v1092
        %v1094 = vcombine.high %v1072, %v1072
        %v1095 = vcombine.high %v1079, %v1079
        %v1096 = vcombine.high %v1086, %v1086
        %v1097 = vcombine.high %v1093, %v1093
        %v1098 = vcombine.high %v920, %v920
        %v1100 = vunpack.c.l.s4 1966171168
        %v1101 = vunpack.c.0.s8 %v1100
        %v1102 = vlaneseq
        %v1103 = vshrl.u32 %v1102, 7
        %v1104 = vsub.s32 %v1101, %v1103
        %v1105 = vrot.slane %v920, %v1104
        %v1107 = vunpack.c.l.s4 1966171168
        %v1108 = vunpack.c.0.s8 %v1107
        %v1109 = vlaneseq
        %v1110 = vshrl.u32 %v1109, 7
        %v1111 = vsub.s32 %v1108, %v1110
        %v1112 = vrot.slane %v1098, %v1111
        %v1113 = vcombine.high %v1105, %v1105
        %v1114 = vcombine.high %v1112, %v1112
        %v1116 = vunpack.c.l.s4 1966171168
        %v1117 = vunpack.c.0.s8 %v1116
        %v1118 = vlaneseq
        %v1119 = vshrl.u32 %v1118, 7
        %v1120 = vsub.s32 %v1117, %v1119
        %v1121 = vrot.slane %v1105, %v1120
        %v1123 = vunpack.c.l.s4 1966171168
        %v1124 = vunpack.c.0.s8 %v1123
        %v1125 = vlaneseq
        %v1126 = vshrl.u32 %v1125, 7
        %v1127 = vsub.s32 %v1124, %v1126
        %v1128 = vrot.slane %v1112, %v1127
        %v1130 = vunpack.c.l.s4 1966171168
        %v1131 = vunpack.c.0.s8 %v1130
        %v1132 = vlaneseq
        %v1133 = vshrl.u32 %v1132, 7
        %v1134 = vsub.s32 %v1131, %v1133
        %v1135 = vrot.slane %v1113, %v1134
        %v1137 = vunpack.c.l.s4 1966171168
        %v1138 = vunpack.c.0.s8 %v1137
        %v1139 = vlaneseq
        %v1140 = vshrl.u32 %v1139, 7
        %v1141 = vsub.s32 %v1138, %v1140
        %v1142 = vrot.slane %v1114, %v1141
        %v1143 = vcombine.high %v1121, %v1121
        %v1144 = vcombine.high %v1128, %v1128
        %v1145 = vcombine.high %v1135, %v1135
        %v1146 = vcombine.high %v1142, %v1142
        %v1147 = vcombine.high %v925, %v925
        %v1149 = vunpack.c.l.s4 1966171168
        %v1150 = vunpack.c.0.s8 %v1149
        %v1151 = vlaneseq
        %v1152 = vshrl.u32 %v1151, 7
        %v1153 = vsub.s32 %v1150, %v1152
        %v1154 = vrot.slane %v925, %v1153
        %v1156 = vunpack.c.l.s4 1966171168
        %v1157 = vunpack.c.0.s8 %v1156
        %v1158 = vlaneseq
        %v1159 = vshrl.u32 %v1158, 7
        %v1160 = vsub.s32 %v1157, %v1159
        %v1161 = vrot.slane %v1147, %v1160
        %v1162 = vcombine.high %v1154, %v1154
        %v1163 = vcombine.high %v1161, %v1161
        %v1165 = vunpack.c.l.s4 1966171168
        %v1166 = vunpack.c.0.s8 %v1165
        %v1167 = vlaneseq
        %v1168 = vshrl.u32 %v1167, 7
        %v1169 = vsub.s32 %v1166, %v1168
        %v1170 = vrot.slane %v1154, %v1169
        %v1172 = vunpack.c.l.s4 1966171168
        %v1173 = vunpack.c.0.s8 %v1172
        %v1174 = vlaneseq
        %v1175 = vshrl.u32 %v1174, 7
        %v1176 = vsub.s32 %v1173, %v1175
        %v1177 = vrot.slane %v1161, %v1176
        %v1179 = vunpack.c.l.s4 1966171168
        %v1180 = vunpack.c.0.s8 %v1179
        %v1181 = vlaneseq
        %v1182 = vshrl.u32 %v1181, 7
        %v1183 = vsub.s32 %v1180, %v1182
        %v1184 = vrot.slane %v1162, %v1183
        %v1186 = vunpack.c.l.s4 1966171168
        %v1187 = vunpack.c.0.s8 %v1186
        %v1188 = vlaneseq
        %v1189 = vshrl.u32 %v1188, 7
        %v1190 = vsub.s32 %v1187, %v1189
        %v1191 = vrot.slane %v1163, %v1190
        %v1192 = vcombine.high %v1170, %v1170
        %v1193 = vcombine.high %v1177, %v1177
        %v1194 = vcombine.high %v1184, %v1184
        %v1195 = vcombine.high %v1191, %v1191
        %v1196 = vcombine.high %v930, %v930
        %v1198 = vunpack.c.l.s4 1966171168
        %v1199 = vunpack.c.0.s8 %v1198
        %v1200 = vlaneseq
        %v1201 = vshrl.u32 %v1200, 7
        %v1202 = vsub.s32 %v1199, %v1201
        %v1203 = vrot.slane %v930, %v1202
        %v1205 = vunpack.c.l.s4 1966171168
        %v1206 = vunpack.c.0.s8 %v1205
        %v1207 = vlaneseq
        %v1208 = vshrl.u32 %v1207, 7
        %v1209 = vsub.s32 %v1206, %v1208
        %v1210 = vrot.slane %v1196, %v1209
        %v1211 = vcombine.high %v1203, %v1203
        %v1212 = vcombine.high %v1210, %v1210
        %v1214 = vunpack.c.l.s4 1966171168
        %v1215 = vunpack.c.0.s8 %v1214
        %v1216 = vlaneseq
        %v1217 = vshrl.u32 %v1216, 7
        %v1218 = vsub.s32 %v1215, %v1217
        %v1219 = vrot.slane %v1203, %v1218
        %v1221 = vunpack.c.l.s4 1966171168
        %v1222 = vunpack.c.0.s8 %v1221
        %v1223 = vlaneseq
        %v1224 = vshrl.u32 %v1223, 7
        %v1225 = vsub.s32 %v1222, %v1224
        %v1226 = vrot.slane %v1210, %v1225
        %v1228 = vunpack.c.l.s4 1966171168
        %v1229 = vunpack.c.0.s8 %v1228
        %v1230 = vlaneseq
        %v1231 = vshrl.u32 %v1230, 7
        %v1232 = vsub.s32 %v1229, %v1231
        %v1233 = vrot.slane %v1211, %v1232
        %v1235 = vunpack.c.l.s4 1966171168
        %v1236 = vunpack.c.0.s8 %v1235
        %v1237 = vlaneseq
        %v1238 = vshrl.u32 %v1237, 7
        %v1239 = vsub.s32 %v1236, %v1238
        %v1240 = vrot.slane %v1212, %v1239
        %v1241 = vcombine.high %v1219, %v1219
        %v1242 = vcombine.high %v1226, %v1226
        %v1243 = vcombine.high %v1233, %v1233
        %v1244 = vcombine.high %v1240, %v1240
        %v1245 = vcombine.high %v935, %v935
        %v1247 = vunpack.c.l.s4 1966171168
        %v1248 = vunpack.c.0.s8 %v1247
        %v1249 = vlaneseq
        %v1250 = vshrl.u32 %v1249, 7
        %v1251 = vsub.s32 %v1248, %v1250
        %v1252 = vrot.slane %v935, %v1251
        %v1254 = vunpack.c.l.s4 1966171168
        %v1255 = vunpack.c.0.s8 %v1254
        %v1256 = vlaneseq
        %v1257 = vshrl.u32 %v1256, 7
        %v1258 = vsub.s32 %v1255, %v1257
        %v1259 = vrot.slane %v1245, %v1258
        %v1260 = vcombine.high %v1252, %v1252
        %v1261 = vcombine.high %v1259, %v1259
        %v1263 = vunpack.c.l.s4 1966171168
        %v1264 = vunpack.c.0.s8 %v1263
        %v1265 = vlaneseq
        %v1266 = vshrl.u32 %v1265, 7
        %v1267 = vsub.s32 %v1264, %v1266
        %v1268 = vrot.slane %v1252, %v1267
        %v1270 = vunpack.c.l.s4 1966171168
        %v1271 = vunpack.c.0.s8 %v1270
        %v1272 = vlaneseq
        %v1273 = vshrl.u32 %v1272, 7
        %v1274 = vsub.s32 %v1271, %v1273
        %v1275 = vrot.slane %v1259, %v1274
        %v1277 = vunpack.c.l.s4 1966171168
        %v1278 = vunpack.c.0.s8 %v1277
        %v1279 = vlaneseq
        %v1280 = vshrl.u32 %v1279, 7
        %v1281 = vsub.s32 %v1278, %v1280
        %v1282 = vrot.slane %v1260, %v1281
        %v1284 = vunpack.c.l.s4 1966171168
        %v1285 = vunpack.c.0.s8 %v1284
        %v1286 = vlaneseq
        %v1287 = vshrl.u32 %v1286, 7
        %v1288 = vsub.s32 %v1285, %v1287
        %v1289 = vrot.slane %v1261, %v1288
        %v1290 = vcombine.high %v1268, %v1268
        %v1291 = vcombine.high %v1275, %v1275
        %v1292 = vcombine.high %v1282, %v1282
        %v1293 = vcombine.high %v1289, %v1289
        %v1294 = vcombine.high %v940, %v940
        %v1296 = vunpack.c.l.s4 1966171168
        %v1297 = vunpack.c.0.s8 %v1296
        %v1298 = vlaneseq
        %v1299 = vshrl.u32 %v1298, 7
        %v1300 = vsub.s32 %v1297, %v1299
        %v1301 = vrot.slane %v940, %v1300
        %v1303 = vunpack.c.l.s4 1966171168
        %v1304 = vunpack.c.0.s8 %v1303
        %v1305 = vlaneseq
        %v1306 = vshrl.u32 %v1305, 7
        %v1307 = vsub.s32 %v1304, %v1306
        %v1308 = vrot.slane %v1294, %v1307
        %v1309 = vcombine.high %v1301, %v1301
        %v1310 = vcombine.high %v1308, %v1308
        %v1312 = vunpack.c.l.s4 1966171168
        %v1313 = vunpack.c.0.s8 %v1312
        %v1314 = vlaneseq
        %v1315 = vshrl.u32 %v1314, 7
        %v1316 = vsub.s32 %v1313, %v1315
        %v1317 = vrot.slane %v1301, %v1316
        %v1319 = vunpack.c.l.s4 1966171168
        %v1320 = vunpack.c.0.s8 %v1319
        %v1321 = vlaneseq
        %v1322 = vshrl.u32 %v1321, 7
        %v1323 = vsub.s32 %v1320, %v1322
        %v1324 = vrot.slane %v1308, %v1323
        %v1326 = vunpack.c.l.s4 1966171168
        %v1327 = vunpack.c.0.s8 %v1326
        %v1328 = vlaneseq
        %v1329 = vshrl.u32 %v1328, 7
        %v1330 = vsub.s32 %v1327, %v1329
        %v1331 = vrot.slane %v1309, %v1330
        %v1333 = vunpack.c.l.s4 1966171168
        %v1334 = vunpack.c.0.s8 %v1333
        %v1335 = vlaneseq
        %v1336 = vshrl.u32 %v1335, 7
        %v1337 = vsub.s32 %v1334, %v1336
        %v1338 = vrot.slane %v1310, %v1337
        %v1339 = vcombine.high %v1317, %v1317
        %v1340 = vcombine.high %v1324, %v1324
        %v1341 = vcombine.high %v1331, %v1331
        %v1342 = vcombine.high %v1338, %v1338
        %v1343 = vlaneseq
        %v1344 = vshrl.u32 %v1343, 7
        %v1345 = vsub.s32 0, %v1344
        %v1346 = vrot.slane %v974, %v1345
        %v1347 = vlaneseq
        %v1348 = vshrl.u32 %v1347, 7
        %v1349 = vsub.s32 0, %v1348
        %v1350 = vrot.slane %v988, %v1349
        %v1351 = vlaneseq
        %v1352 = vshrl.u32 %v1351, 7
        %v1353 = vsub.s32 0, %v1352
        %v1354 = vrot.slane %v996, %v1353
        %v1355 = vlaneseq
        %v1356 = vshrl.u32 %v1355, 7
        %v1357 = vsub.s32 0, %v1356
        %v1358 = vrot.slane %v998, %v1357
        %v1359 = vlaneseq
        %v1360 = vshrl.u32 %v1359, 7
        %v1361 = vsub.s32 0, %v1360
        %v1362 = vrot.slane %v981, %v1361
        %v1363 = vlaneseq
        %v1364 = vshrl.u32 %v1363, 7
        %v1365 = vsub.s32 0, %v1364
        %v1366 = vrot.slane %v995, %v1365
        %v1367 = vlaneseq
        %v1368 = vshrl.u32 %v1367, 7
        %v1369 = vsub.s32 0, %v1368
        %v1370 = vrot.slane %v997, %v1369
        %v1371 = vlaneseq
        %v1372 = vshrl.u32 %v1371, 7
        %v1373 = vsub.s32 0, %v1372
        %v1374 = vrot.slane %v999, %v1373
        %v1375 = vlaneseq
        %v1376 = vshrl.u32 %v1375, 7
        %v1377 = vsub.s32 0, %v1376
        %v1378 = vrot.slane %v1023, %v1377
        %v1379 = vlaneseq
        %v1380 = vshrl.u32 %v1379, 7
        %v1381 = vsub.s32 0, %v1380
        %v1382 = vrot.slane %v1037, %v1381
        %v1383 = vlaneseq
        %v1384 = vshrl.u32 %v1383, 7
        %v1385 = vsub.s32 0, %v1384
        %v1386 = vrot.slane %v1045, %v1385
        %v1387 = vlaneseq
        %v1388 = vshrl.u32 %v1387, 7
        %v1389 = vsub.s32 0, %v1388
        %v1390 = vrot.slane %v1047, %v1389
        %v1391 = vlaneseq
        %v1392 = vshrl.u32 %v1391, 7
        %v1393 = vsub.s32 0, %v1392
        %v1394 = vrot.slane %v1030, %v1393
        %v1395 = vlaneseq
        %v1396 = vshrl.u32 %v1395, 7
        %v1397 = vsub.s32 0, %v1396
        %v1398 = vrot.slane %v1044, %v1397
        %v1399 = vlaneseq
        %v1400 = vshrl.u32 %v1399, 7
        %v1401 = vsub.s32 0, %v1400
        %v1402 = vrot.slane %v1046, %v1401
        %v1403 = vlaneseq
        %v1404 = vshrl.u32 %v1403, 7
        %v1405 = vsub.s32 0, %v1404
        %v1406 = vrot.slane %v1048, %v1405
        %v1407 = vlaneseq
        %v1408 = vshrl.u32 %v1407, 7
        %v1409 = vsub.s32 0, %v1408
        %v1410 = vrot.slane %v1072, %v1409
        %v1411 = vlaneseq
        %v1412 = vshrl.u32 %v1411, 7
        %v1413 = vsub.s32 0, %v1412
        %v1414 = vrot.slane %v1086, %v1413
        %v1415 = vlaneseq
        %v1416 = vshrl.u32 %v1415, 7
        %v1417 = vsub.s32 0, %v1416
        %v1418 = vrot.slane %v1094, %v1417
        %v1419 = vlaneseq
        %v1420 = vshrl.u32 %v1419, 7
        %v1421 = vsub.s32 0, %v1420
        %v1422 = vrot.slane %v1096, %v1421
        %v1423 = vlaneseq
        %v1424 = vshrl.u32 %v1423, 7
        %v1425 = vsub.s32 0, %v1424
        %v1426 = vrot.slane %v1079, %v1425
        %v1427 = vlaneseq
        %v1428 = vshrl.u32 %v1427, 7
        %v1429 = vsub.s32 0, %v1428
        %v1430 = vrot.slane %v1093, %v1429
        %v1431 = vlaneseq
        %v1432 = vshrl.u32 %v1431, 7
        %v1433 = vsub.s32 0, %v1432
        %v1434 = vrot.slane %v1095, %v1433
        %v1435 = vlaneseq
        %v1436 = vshrl.u32 %v1435, 7
        %v1437 = vsub.s32 0, %v1436
        %v1438 = vrot.slane %v1097, %v1437
        %v1439 = vlaneseq
        %v1440 = vshrl.u32 %v1439, 7
        %v1441 = vsub.s32 0, %v1440
        %v1442 = vrot.slane %v1121, %v1441
        %v1443 = vlaneseq
        %v1444 = vshrl.u32 %v1443, 7
        %v1445 = vsub.s32 0, %v1444
        %v1446 = vrot.slane %v1135, %v1445
        %v1447 = vlaneseq
        %v1448 = vshrl.u32 %v1447, 7
        %v1449 = vsub.s32 0, %v1448
        %v1450 = vrot.slane %v1143, %v1449
        %v1451 = vlaneseq
        %v1452 = vshrl.u32 %v1451, 7
        %v1453 = vsub.s32 0, %v1452
        %v1454 = vrot.slane %v1145, %v1453
        %v1455 = vlaneseq
        %v1456 = vshrl.u32 %v1455, 7
        %v1457 = vsub.s32 0, %v1456
        %v1458 = vrot.slane %v1128, %v1457
        %v1459 = vlaneseq
        %v1460 = vshrl.u32 %v1459, 7
        %v1461 = vsub.s32 0, %v1460
        %v1462 = vrot.slane %v1142, %v1461
        %v1463 = vlaneseq
        %v1464 = vshrl.u32 %v1463, 7
        %v1465 = vsub.s32 0, %v1464
        %v1466 = vrot.slane %v1144, %v1465
        %v1467 = vlaneseq
        %v1468 = vshrl.u32 %v1467, 7
        %v1469 = vsub.s32 0, %v1468
        %v1470 = vrot.slane %v1146, %v1469
        %v1471 = vlaneseq
        %v1472 = vshrl.u32 %v1471, 7
        %v1473 = vsub.s32 0, %v1472
        %v1474 = vrot.slane %v1170, %v1473
        %v1475 = vlaneseq
        %v1476 = vshrl.u32 %v1475, 7
        %v1477 = vsub.s32 0, %v1476
        %v1478 = vrot.slane %v1184, %v1477
        %v1479 = vlaneseq
        %v1480 = vshrl.u32 %v1479, 7
        %v1481 = vsub.s32 0, %v1480
        %v1482 = vrot.slane %v1192, %v1481
        %v1483 = vlaneseq
        %v1484 = vshrl.u32 %v1483, 7
        %v1485 = vsub.s32 0, %v1484
        %v1486 = vrot.slane %v1194, %v1485
        %v1487 = vlaneseq
        %v1488 = vshrl.u32 %v1487, 7
        %v1489 = vsub.s32 0, %v1488
        %v1490 = vrot.slane %v1177, %v1489
        %v1491 = vlaneseq
        %v1492 = vshrl.u32 %v1491, 7
        %v1493 = vsub.s32 0, %v1492
        %v1494 = vrot.slane %v1191, %v1493
        %v1495 = vlaneseq
        %v1496 = vshrl.u32 %v1495, 7
        %v1497 = vsub.s32 0, %v1496
        %v1498 = vrot.slane %v1193, %v1497
        %v1499 = vlaneseq
        %v1500 = vshrl.u32 %v1499, 7
        %v1501 = vsub.s32 0, %v1500
        %v1502 = vrot.slane %v1195, %v1501
        %v1503 = vlaneseq
        %v1504 = vshrl.u32 %v1503, 7
        %v1505 = vsub.s32 0, %v1504
        %v1506 = vrot.slane %v1219, %v1505
        %v1507 = vlaneseq
        %v1508 = vshrl.u32 %v1507, 7
        %v1509 = vsub.s32 0, %v1508
        %v1510 = vrot.slane %v1233, %v1509
        %v1511 = vlaneseq
        %v1512 = vshrl.u32 %v1511, 7
        %v1513 = vsub.s32 0, %v1512
        %v1514 = vrot.slane %v1241, %v1513
        %v1515 = vlaneseq
        %v1516 = vshrl.u32 %v1515, 7
        %v1517 = vsub.s32 0, %v1516
        %v1518 = vrot.slane %v1243, %v1517
        %v1519 = vlaneseq
        %v1520 = vshrl.u32 %v1519, 7
        %v1521 = vsub.s32 0, %v1520
        %v1522 = vrot.slane %v1226, %v1521
        %v1523 = vlaneseq
        %v1524 = vshrl.u32 %v1523, 7
        %v1525 = vsub.s32 0, %v1524
        %v1526 = vrot.slane %v1240, %v1525
        %v1527 = vlaneseq
        %v1528 = vshrl.u32 %v1527, 7
        %v1529 = vsub.s32 0, %v1528
        %v1530 = vrot.slane %v1242, %v1529
        %v1531 = vlaneseq
        %v1532 = vshrl.u32 %v1531, 7
        %v1533 = vsub.s32 0, %v1532
        %v1534 = vrot.slane %v1244, %v1533
        %v1535 = vlaneseq
        %v1536 = vshrl.u32 %v1535, 7
        %v1537 = vsub.s32 0, %v1536
        %v1538 = vrot.slane %v1268, %v1537
        %v1539 = vlaneseq
        %v1540 = vshrl.u32 %v1539, 7
        %v1541 = vsub.s32 0, %v1540
        %v1542 = vrot.slane %v1282, %v1541
        %v1543 = vlaneseq
        %v1544 = vshrl.u32 %v1543, 7
        %v1545 = vsub.s32 0, %v1544
        %v1546 = vrot.slane %v1290, %v1545
        %v1547 = vlaneseq
        %v1548 = vshrl.u32 %v1547, 7
        %v1549 = vsub.s32 0, %v1548
        %v1550 = vrot.slane %v1292, %v1549
        %v1551 = vlaneseq
        %v1552 = vshrl.u32 %v1551, 7
        %v1553 = vsub.s32 0, %v1552
        %v1554 = vrot.slane %v1275, %v1553
        %v1555 = vlaneseq
        %v1556 = vshrl.u32 %v1555, 7
        %v1557 = vsub.s32 0, %v1556
        %v1558 = vrot.slane %v1289, %v1557
        %v1559 = vlaneseq
        %v1560 = vshrl.u32 %v1559, 7
        %v1561 = vsub.s32 0, %v1560
        %v1562 = vrot.slane %v1291, %v1561
        %v1563 = vlaneseq
        %v1564 = vshrl.u32 %v1563, 7
        %v1565 = vsub.s32 0, %v1564
        %v1566 = vrot.slane %v1293, %v1565
        %v1567 = vlaneseq
        %v1568 = vshrl.u32 %v1567, 7
        %v1569 = vsub.s32 0, %v1568
        %v1570 = vrot.slane %v1317, %v1569
        %v1571 = vlaneseq
        %v1572 = vshrl.u32 %v1571, 7
        %v1573 = vsub.s32 0, %v1572
        %v1574 = vrot.slane %v1331, %v1573
        %v1575 = vlaneseq
        %v1576 = vshrl.u32 %v1575, 7
        %v1577 = vsub.s32 0, %v1576
        %v1578 = vrot.slane %v1339, %v1577
        %v1579 = vlaneseq
        %v1580 = vshrl.u32 %v1579, 7
        %v1581 = vsub.s32 0, %v1580
        %v1582 = vrot.slane %v1341, %v1581
        %v1583 = vlaneseq
        %v1584 = vshrl.u32 %v1583, 7
        %v1585 = vsub.s32 0, %v1584
        %v1586 = vrot.slane %v1324, %v1585
        %v1587 = vlaneseq
        %v1588 = vshrl.u32 %v1587, 7
        %v1589 = vsub.s32 0, %v1588
        %v1590 = vrot.slane %v1338, %v1589
        %v1591 = vlaneseq
        %v1592 = vshrl.u32 %v1591, 7
        %v1593 = vsub.s32 0, %v1592
        %v1594 = vrot.slane %v1340, %v1593
        %v1595 = vlaneseq
        %v1596 = vshrl.u32 %v1595, 7
        %v1597 = vsub.s32 0, %v1596
        %v1598 = vrot.slane %v1342, %v1597
        %v1599 = vcombine.low %v1346, %v1350
        %v1600 = vcombine.low %v1354, %v1358
        %v1602 = vunpack.c.l.s4 1983009808
        %v1603 = vunpack.c.0.s8 %v1602
        %v1604 = vlaneseq
        %v1605 = vshrl.u32 %v1604, 7
        %v1606 = vsub.s32 %v1603, %v1605
        %v1607 = vrot.slane %v1599, %v1606
        %v1609 = vunpack.c.l.s4 1983009808
        %v1610 = vunpack.c.0.s8 %v1609
        %v1611 = vlaneseq
        %v1612 = vshrl.u32 %v1611, 7
        %v1613 = vsub.s32 %v1610, %v1612
        %v1614 = vrot.slane %v1600, %v1613
        %v1615 = vcombine.low %v1607, %v1614
        %v1616 = vcombine.low %v1362, %v1366
        %v1617 = vcombine.low %v1370, %v1374
        %v1619 = vunpack.c.l.s4 1983009808
        %v1620 = vunpack.c.0.s8 %v1619
        %v1621 = vlaneseq
        %v1622 = vshrl.u32 %v1621, 7
        %v1623 = vsub.s32 %v1620, %v1622
        %v1624 = vrot.slane %v1616, %v1623
        %v1626 = vunpack.c.l.s4 1983009808
        %v1627 = vunpack.c.0.s8 %v1626
        %v1628 = vlaneseq
        %v1629 = vshrl.u32 %v1628, 7
        %v1630 = vsub.s32 %v1627, %v1629
        %v1631 = vrot.slane %v1617, %v1630
        %v1632 = vcombine.low %v1624, %v1631
        %v1633 = vcombine.low %v1378, %v1382
        %v1634 = vcombine.low %v1386, %v1390
        %v1636 = vunpack.c.l.s4 1983009808
        %v1637 = vunpack.c.0.s8 %v1636
        %v1638 = vlaneseq
        %v1639 = vshrl.u32 %v1638, 7
        %v1640 = vsub.s32 %v1637, %v1639
        %v1641 = vrot.slane %v1633, %v1640
        %v1643 = vunpack.c.l.s4 1983009808
        %v1644 = vunpack.c.0.s8 %v1643
        %v1645 = vlaneseq
        %v1646 = vshrl.u32 %v1645, 7
        %v1647 = vsub.s32 %v1644, %v1646
        %v1648 = vrot.slane %v1634, %v1647
        %v1649 = vcombine.low %v1641, %v1648
        %v1650 = vcombine.low %v1394, %v1398
        %v1651 = vcombine.low %v1402, %v1406
        %v1653 = vunpack.c.l.s4 1983009808
        %v1654 = vunpack.c.0.s8 %v1653
        %v1655 = vlaneseq
        %v1656 = vshrl.u32 %v1655, 7
        %v1657 = vsub.s32 %v1654, %v1656
        %v1658 = vrot.slane %v1650, %v1657
        %v1660 = vunpack.c.l.s4 1983009808
        %v1661 = vunpack.c.0.s8 %v1660
        %v1662 = vlaneseq
        %v1663 = vshrl.u32 %v1662, 7
        %v1664 = vsub.s32 %v1661, %v1663
        %v1665 = vrot.slane %v1651, %v1664
        %v1666 = vcombine.low %v1658, %v1665
        %v1667 = vcombine.low %v1410, %v1414
        %v1668 = vcombine.low %v1418, %v1422
        %v1670 = vunpack.c.l.s4 1983009808
        %v1671 = vunpack.c.0.s8 %v1670
        %v1672 = vlaneseq
        %v1673 = vshrl.u32 %v1672, 7
        %v1674 = vsub.s32 %v1671, %v1673
        %v1675 = vrot.slane %v1667, %v1674
        %v1677 = vunpack.c.l.s4 1983009808
        %v1678 = vunpack.c.0.s8 %v1677
        %v1679 = vlaneseq
        %v1680 = vshrl.u32 %v1679, 7
        %v1681 = vsub.s32 %v1678, %v1680
        %v1682 = vrot.slane %v1668, %v1681
        %v1683 = vcombine.low %v1675, %v1682
        %v1684 = vcombine.low %v1426, %v1430
        %v1685 = vcombine.low %v1434, %v1438
        %v1687 = vunpack.c.l.s4 1983009808
        %v1688 = vunpack.c.0.s8 %v1687
        %v1689 = vlaneseq
        %v1690 = vshrl.u32 %v1689, 7
        %v1691 = vsub.s32 %v1688, %v1690
        %v1692 = vrot.slane %v1684, %v1691
        %v1694 = vunpack.c.l.s4 1983009808
        %v1695 = vunpack.c.0.s8 %v1694
        %v1696 = vlaneseq
        %v1697 = vshrl.u32 %v1696, 7
        %v1698 = vsub.s32 %v1695, %v1697
        %v1699 = vrot.slane %v1685, %v1698
        %v1700 = vcombine.low %v1692, %v1699
        %v1701 = vcombine.low %v1442, %v1446
        %v1702 = vcombine.low %v1450, %v1454
        %v1704 = vunpack.c.l.s4 1983009808
        %v1705 = vunpack.c.0.s8 %v1704
        %v1706 = vlaneseq
        %v1707 = vshrl.u32 %v1706, 7
        %v1708 = vsub.s32 %v1705, %v1707
        %v1709 = vrot.slane %v1701, %v1708
        %v1711 = vunpack.c.l.s4 1983009808
        %v1712 = vunpack.c.0.s8 %v1711
        %v1713 = vlaneseq
        %v1714 = vshrl.u32 %v1713, 7
        %v1715 = vsub.s32 %v1712, %v1714
        %v1716 = vrot.slane %v1702, %v1715
        %v1717 = vcombine.low %v1709, %v1716
        %v1718 = vcombine.low %v1458, %v1462
        %v1719 = vcombine.low %v1466, %v1470
        %v1721 = vunpack.c.l.s4 1983009808
        %v1722 = vunpack.c.0.s8 %v1721
        %v1723 = vlaneseq
        %v1724 = vshrl.u32 %v1723, 7
        %v1725 = vsub.s32 %v1722, %v1724
        %v1726 = vrot.slane %v1718, %v1725
        %v1728 = vunpack.c.l.s4 1983009808
        %v1729 = vunpack.c.0.s8 %v1728
        %v1730 = vlaneseq
        %v1731 = vshrl.u32 %v1730, 7
        %v1732 = vsub.s32 %v1729, %v1731
        %v1733 = vrot.slane %v1719, %v1732
        %v1734 = vcombine.low %v1726, %v1733
        %v1735 = vcombine.low %v1474, %v1478
        %v1736 = vcombine.low %v1482, %v1486
        %v1738 = vunpack.c.l.s4 1983009808
        %v1739 = vunpack.c.0.s8 %v1738
        %v1740 = vlaneseq
        %v1741 = vshrl.u32 %v1740, 7
        %v1742 = vsub.s32 %v1739, %v1741
        %v1743 = vrot.slane %v1735, %v1742
        %v1745 = vunpack.c.l.s4 1983009808
        %v1746 = vunpack.c.0.s8 %v1745
        %v1747 = vlaneseq
        %v1748 = vshrl.u32 %v1747, 7
        %v1749 = vsub.s32 %v1746, %v1748
        %v1750 = vrot.slane %v1736, %v1749
        %v1751 = vcombine.low %v1743, %v1750
        %v1752 = vcombine.low %v1490, %v1494
        %v1753 = vcombine.low %v1498, %v1502
        %v1755 = vunpack.c.l.s4 1983009808
        %v1756 = vunpack.c.0.s8 %v1755
        %v1757 = vlaneseq
        %v1758 = vshrl.u32 %v1757, 7
        %v1759 = vsub.s32 %v1756, %v1758
        %v1760 = vrot.slane %v1752, %v1759
        %v1762 = vunpack.c.l.s4 1983009808
        %v1763 = vunpack.c.0.s8 %v1762
        %v1764 = vlaneseq
        %v1765 = vshrl.u32 %v1764, 7
        %v1766 = vsub.s32 %v1763, %v1765
        %v1767 = vrot.slane %v1753, %v1766
        %v1768 = vcombine.low %v1760, %v1767
        %v1769 = vcombine.low %v1506, %v1510
        %v1770 = vcombine.low %v1514, %v1518
        %v1772 = vunpack.c.l.s4 1983009808
        %v1773 = vunpack.c.0.s8 %v1772
        %v1774 = vlaneseq
        %v1775 = vshrl.u32 %v1774, 7
        %v1776 = vsub.s32 %v1773, %v1775
        %v1777 = vrot.slane %v1769, %v1776
        %v1779 = vunpack.c.l.s4 1983009808
        %v1780 = vunpack.c.0.s8 %v1779
        %v1781 = vlaneseq
        %v1782 = vshrl.u32 %v1781, 7
        %v1783 = vsub.s32 %v1780, %v1782
        %v1784 = vrot.slane %v1770, %v1783
        %v1785 = vcombine.low %v1777, %v1784
        %v1786 = vcombine.low %v1522, %v1526
        %v1787 = vcombine.low %v1530, %v1534
        %v1789 = vunpack.c.l.s4 1983009808
        %v1790 = vunpack.c.0.s8 %v1789
        %v1791 = vlaneseq
        %v1792 = vshrl.u32 %v1791, 7
        %v1793 = vsub.s32 %v1790, %v1792
        %v1794 = vrot.slane %v1786, %v1793
        %v1796 = vunpack.c.l.s4 1983009808
        %v1797 = vunpack.c.0.s8 %v1796
        %v1798 = vlaneseq
        %v1799 = vshrl.u32 %v1798, 7
        %v1800 = vsub.s32 %v1797, %v1799
        %v1801 = vrot.slane %v1787, %v1800
        %v1802 = vcombine.low %v1794, %v1801
        %v1803 = vcombine.low %v1538, %v1542
        %v1804 = vcombine.low %v1546, %v1550
        %v1806 = vunpack.c.l.s4 1983009808
        %v1807 = vunpack.c.0.s8 %v1806
        %v1808 = vlaneseq
        %v1809 = vshrl.u32 %v1808, 7
        %v1810 = vsub.s32 %v1807, %v1809
        %v1811 = vrot.slane %v1803, %v1810
        %v1813 = vunpack.c.l.s4 1983009808
        %v1814 = vunpack.c.0.s8 %v1813
        %v1815 = vlaneseq
        %v1816 = vshrl.u32 %v1815, 7
        %v1817 = vsub.s32 %v1814, %v1816
        %v1818 = vrot.slane %v1804, %v1817
        %v1819 = vcombine.low %v1811, %v1818
        %v1820 = vcombine.low %v1554, %v1558
        %v1821 = vcombine.low %v1562, %v1566
        %v1823 = vunpack.c.l.s4 1983009808
        %v1824 = vunpack.c.0.s8 %v1823
        %v1825 = vlaneseq
        %v1826 = vshrl.u32 %v1825, 7
        %v1827 = vsub.s32 %v1824, %v1826
        %v1828 = vrot.slane %v1820, %v1827
        %v1830 = vunpack.c.l.s4 1983009808
        %v1831 = vunpack.c.0.s8 %v1830
        %v1832 = vlaneseq
        %v1833 = vshrl.u32 %v1832, 7
        %v1834 = vsub.s32 %v1831, %v1833
        %v1835 = vrot.slane %v1821, %v1834
        %v1836 = vcombine.low %v1828, %v1835
        %v1837 = vcombine.low %v1570, %v1574
        %v1838 = vcombine.low %v1578, %v1582
        %v1840 = vunpack.c.l.s4 1983009808
        %v1841 = vunpack.c.0.s8 %v1840
        %v1842 = vlaneseq
        %v1843 = vshrl.u32 %v1842, 7
        %v1844 = vsub.s32 %v1841, %v1843
        %v1845 = vrot.slane %v1837, %v1844
        %v1847 = vunpack.c.l.s4 1983009808
        %v1848 = vunpack.c.0.s8 %v1847
        %v1849 = vlaneseq
        %v1850 = vshrl.u32 %v1849, 7
        %v1851 = vsub.s32 %v1848, %v1850
        %v1852 = vrot.slane %v1838, %v1851
        %v1853 = vcombine.low %v1845, %v1852
        %v1854 = vcombine.low %v1586, %v1590
        %v1855 = vcombine.low %v1594, %v1598
        %v1857 = vunpack.c.l.s4 1983009808
        %v1858 = vunpack.c.0.s8 %v1857
        %v1859 = vlaneseq
        %v1860 = vshrl.u32 %v1859, 7
        %v1861 = vsub.s32 %v1858, %v1860
        %v1862 = vrot.slane %v1854, %v1861
        %v1864 = vunpack.c.l.s4 1983009808
        %v1865 = vunpack.c.0.s8 %v1864
        %v1866 = vlaneseq
        %v1867 = vshrl.u32 %v1866, 7
        %v1868 = vsub.s32 %v1865, %v1867
        %v1869 = vrot.slane %v1855, %v1868
        %v1870 = vcombine.low %v1862, %v1869
        %v1887 = vadd.f32 %v623, %v1615
        %v1888 = vadd.f32 %v628, %v1632
        %v1889 = vadd.f32 %v633, %v1615
        %v1890 = vadd.f32 %v638, %v1632
        %v1891 = vadd.f32 %v643, %v1649
        %v1892 = vadd.f32 %v648, %v1666
        %v1893 = vadd.f32 %v653, %v1649
        %v1894 = vadd.f32 %v658, %v1666
        %v1895 = vadd.f32 %v663, %v1683
        %v1896 = vadd.f32 %v668, %v1700
        %v1897 = vadd.f32 %v673, %v1683
        %v1898 = vadd.f32 %v678, %v1700
        %v1899 = vadd.f32 %v683, %v1717
        %v1900 = vadd.f32 %v688, %v1734
        %v1901 = vadd.f32 %v693, %v1717
        %v1902 = vadd.f32 %v698, %v1734
        %v1903 = vadd.f32 %v703, %v1751
        %v1904 = vadd.f32 %v708, %v1768
        %v1905 = vadd.f32 %v713, %v1751
        %v1906 = vadd.f32 %v718, %v1768
        %v1907 = vadd.f32 %v723, %v1785
        %v1908 = vadd.f32 %v728, %v1802
        %v1909 = vadd.f32 %v733, %v1785
        %v1910 = vadd.f32 %v738, %v1802
        %v1911 = vadd.f32 %v743, %v1819
        %v1912 = vadd.f32 %v748, %v1836
        %v1913 = vadd.f32 %v753, %v1819
        %v1914 = vadd.f32 %v758, %v1836
        %v1915 = vadd.f32 %v763, %v1853
        %v1916 = vadd.f32 %v768, %v1870
        %v1917 = vadd.f32 %v773, %v1853
        %v1918 = vadd.f32 %v778, %v1870
        %v1919 = vld [vmem:[%s4] sm:$0x1]
        %v1921 = vlaneseq
        %v1922 = vshrl.u32 %v1921, 7
        %v1923 = vsub.s32 0, %v1922
        %v1924 = vrot.slane %v1919, %v1923
        %v1926 = vadd.f32 %v1887, %v1924
        %v1927 = vadd.f32 %v1888, %v1924
        %v1928 = vadd.f32 %v1889, %v1924
        %v1929 = vadd.f32 %v1890, %v1924
        %v1930 = vadd.f32 %v1891, %v1924
        %v1931 = vadd.f32 %v1892, %v1924
        %v1932 = vadd.f32 %v1893, %v1924
        %v1933 = vadd.f32 %v1894, %v1924
        %v1934 = vadd.f32 %v1895, %v1924
        %v1935 = vadd.f32 %v1896, %v1924
        %v1936 = vadd.f32 %v1897, %v1924
        %v1937 = vadd.f32 %v1898, %v1924
        %v1938 = vadd.f32 %v1899, %v1924
        %v1939 = vadd.f32 %v1900, %v1924
        %v1940 = vadd.f32 %v1901, %v1924
        %v1941 = vadd.f32 %v1902, %v1924
        %v1942 = vadd.f32 %v1903, %v1924
        %v1943 = vadd.f32 %v1904, %v1924
        %v1944 = vadd.f32 %v1905, %v1924
        %v1945 = vadd.f32 %v1906, %v1924
        %v1946 = vadd.f32 %v1907, %v1924
        %v1947 = vadd.f32 %v1908, %v1924
        %v1948 = vadd.f32 %v1909, %v1924
        %v1949 = vadd.f32 %v1910, %v1924
        %v1950 = vadd.f32 %v1911, %v1924
        %v1951 = vadd.f32 %v1912, %v1924
        %v1952 = vadd.f32 %v1913, %v1924
        %v1953 = vadd.f32 %v1914, %v1924
        %v1954 = vadd.f32 %v1915, %v1924
        %v1955 = vadd.f32 %v1916, %v1924
        %v1956 = vadd.f32 %v1917, %v1924
        %v1957 = vadd.f32 %v1918, %v1924
        %1958 = vxpose.xlu0.b32.start [1/16] %v1926, 128
        %1959 = vxpose.xlu0.b32.cont [2/16] %v1927, 128
        %1960 = vxpose.xlu0.b32.cont [3/16] %v1928, 128
        %1961 = vxpose.xlu0.b32.cont [4/16] %v1929, 128
        %1962 = vxpose.xlu0.b32.cont [5/16] %v1930, 128
        %1963 = vxpose.xlu0.b32.cont [6/16] %v1931, 128
        %1964 = vxpose.xlu0.b32.cont [7/16] %v1932, 128
        %1965 = vxpose.xlu0.b32.cont [8/16] %v1933, 128
        %1966 = vxpose.xlu0.b32.cont [9/16] %v1934, 128
        %1967 = vxpose.xlu0.b32.cont [10/16] %v1935, 128
        %1968 = vxpose.xlu0.b32.cont [11/16] %v1936, 128
        %1969 = vxpose.xlu0.b32.cont [12/16] %v1937, 128
        %1970 = vxpose.xlu0.b32.cont [13/16] %v1938, 128
        %1971 = vxpose.xlu0.b32.cont [14/16] %v1939, 128
        %1972 = vxpose.xlu0.b32.cont [15/16] %v1940, 128
        %1973 = vxpose.xlu0.b32.end [16/16] %v1941, 128
        %v1974 = vpop.trf.xlu0
        %v1975 = vpop.trf.xlu0
        %v1976 = vpop.trf.xlu0
        %v1977 = vpop.trf.xlu0
        %v1978 = vpop.trf.xlu0
        %v1979 = vpop.trf.xlu0
        %v1980 = vpop.trf.xlu0
        %v1981 = vpop.trf.xlu0
        %v1982 = vpop.trf.xlu0
        %v1983 = vpop.trf.xlu0
        %v1984 = vpop.trf.xlu0
        %v1985 = vpop.trf.xlu0
        %v1986 = vpop.trf.xlu0
        %v1987 = vpop.trf.xlu0
        %v1988 = vpop.trf.xlu0
        %v1989 = vpop.trf.xlu0
        %1990 = vxpose.xlu0.b32.start [1/16] %v1942, 128
        %1991 = vxpose.xlu0.b32.cont [2/16] %v1943, 128
        %1992 = vxpose.xlu0.b32.cont [3/16] %v1944, 128
        %1993 = vxpose.xlu0.b32.cont [4/16] %v1945, 128
        %1994 = vxpose.xlu0.b32.cont [5/16] %v1946, 128
        %1995 = vxpose.xlu0.b32.cont [6/16] %v1947, 128
        %1996 = vxpose.xlu0.b32.cont [7/16] %v1948, 128
        %1997 = vxpose.xlu0.b32.cont [8/16] %v1949, 128
        %1998 = vxpose.xlu0.b32.cont [9/16] %v1950, 128
        %1999 = vxpose.xlu0.b32.cont [10/16] %v1951, 128
        %2000 = vxpose.xlu0.b32.cont [11/16] %v1952, 128
        %2001 = vxpose.xlu0.b32.cont [12/16] %v1953, 128
        %2002 = vxpose.xlu0.b32.cont [13/16] %v1954, 128
        %2003 = vxpose.xlu0.b32.cont [14/16] %v1955, 128
        %2004 = vxpose.xlu0.b32.cont [15/16] %v1956, 128
        %2005 = vxpose.xlu0.b32.end [16/16] %v1957, 128
        %v2006 = vpop.trf.xlu0
        %v2007 = vpop.trf.xlu0
        %v2008 = vpop.trf.xlu0
        %v2009 = vpop.trf.xlu0
        %v2010 = vpop.trf.xlu0
        %v2011 = vpop.trf.xlu0
        %v2012 = vpop.trf.xlu0
        %v2013 = vpop.trf.xlu0
        %v2014 = vpop.trf.xlu0
        %v2015 = vpop.trf.xlu0
        %v2016 = vpop.trf.xlu0
        %v2017 = vpop.trf.xlu0
        %v2018 = vpop.trf.xlu0
        %v2019 = vpop.trf.xlu0
        %v2020 = vpop.trf.xlu0
        %v2021 = vpop.trf.xlu0
        %v2022 = vmax.f32 %v1974, 0.0
        %v2023 = vmax.f32 %v2006, 0.0
        %v2024 = vmax.f32 %v1975, 0.0
        %v2025 = vmax.f32 %v2007, 0.0
        %v2026 = vmax.f32 %v1976, 0.0
        %v2027 = vmax.f32 %v2008, 0.0
        %v2028 = vmax.f32 %v1977, 0.0
        %v2029 = vmax.f32 %v2009, 0.0
        %2030 = vst [vmem:[%s372] sm:$0xff] %v2022
        %2031 = vst [vmem:[%s372 + $0x8] sm:$0xff] %v2023
        %2032 = vst [vmem:[%s372 + $0x10] sm:$0xff] %v2024
        %2033 = vst [vmem:[%s372 + $0x18] sm:$0xff] %v2025
        %2034 = vst [vmem:[%s372 + $0x20] sm:$0xff] %v2026
        %2035 = vst [vmem:[%s372 + $0x28] sm:$0xff] %v2027
        %2036 = vst [vmem:[%s372 + $0x30] sm:$0xff] %v2028
        %2037 = vst [vmem:[%s372 + $0x38] sm:$0xff] %v2029
        %v2038 = vmax.f32 %v1978, %v1979
        %v2039 = vrot.slane %v2038, 4
        %v2040 = vmax.f32 %v2038, %v2039
        %v2041 = vrot.slane %v2040, 2
        %v2042 = vmax.f32 %v2040, %v2041
        %v2043 = vrot.slane %v2042, 1
        %v2044 = vmax.f32 %v2042, %v2043
        %v2045 = vmax.f32 %v2010, %v2011
        %v2046 = vrot.slane %v2045, 4
        %v2047 = vmax.f32 %v2045, %v2046
        %v2048 = vrot.slane %v2047, 2
        %v2049 = vmax.f32 %v2047, %v2048
        %v2050 = vrot.slane %v2049, 1
        %v2051 = vmax.f32 %v2049, %v2050
        %v2052 = vsub.f32 %v1978, %v2044
        %v2053 = vsub.f32 %v2010, %v2051
        %v2054 = vsub.f32 %v1979, %v2044
        %v2055 = vsub.f32 %v2011, %v2051
        %v2056 = vmul.f32 %v2052, 1.442695
        %v2057 = vpow.pop %v2056
        %v2058 = vmul.f32 %v2053, 1.442695
        %v2059 = vpow.pop %v2058
        %v2060 = vmul.f32 %v2054, 1.442695
        %v2061 = vpow.pop %v2060
        %v2062 = vmul.f32 %v2055, 1.442695
        %v2063 = vpow.pop %v2062
        %v2064 = vadd.f32 %v2057, %v2061
        %v2065 = vrot.slane %v2064, 4
        %v2066 = vadd.f32 %v2064, %v2065
        %v2067 = vrot.slane %v2066, 2
        %v2068 = vadd.f32 %v2066, %v2067
        %v2069 = vrot.slane %v2068, 1
        %v2070 = vadd.f32 %v2068, %v2069
        %v2071 = vadd.f32 %v2059, %v2063
        %v2072 = vrot.slane %v2071, 4
        %v2073 = vadd.f32 %v2071, %v2072
        %v2074 = vrot.slane %v2073, 2
        %v2075 = vadd.f32 %v2073, %v2074
        %v2076 = vrot.slane %v2075, 1
        %v2077 = vadd.f32 %v2075, %v2076
        %v2078 = vrcp.pop %v2070
        %v2079 = vmul.f32 %v2057, %v2078
        %v2080 = vrcp.pop %v2077
        %v2081 = vmul.f32 %v2059, %v2080
        %v2082 = vmul.f32 %v2061, %v2078
        %v2083 = vmul.f32 %v2063, %v2080
        %2084 = vst [vmem:[%s379] sm:$0xff] %v2079
        %2085 = vst [vmem:[%s379 + $0x8] sm:$0xff] %v2081
        %2086 = vst [vmem:[%s379 + $0x10] sm:$0xff] %v2082
        %2087 = vst [vmem:[%s379 + $0x18] sm:$0xff] %v2083
        %v2088 = vxor.u32 %v1980, 2147483648
        %v2089 = vxor.u32 %v2012, 2147483648
        %v2090 = vmul.f32 %v2088, 1.442695
        %v2091 = vpow.pop %v2090
        %v2092 = vmul.f32 %v2089, 1.442695
        %v2093 = vpow.pop %v2092
        %v2094 = vadd.f32 %v2091, 1.0
        %v2095 = vadd.f32 %v2093, 1.0
        %v2096 = vrcp.pop %v2094
        %v2097 = vmul.f32 1.0, %v2096
        %v2098 = vrcp.pop %v2095
        %v2099 = vmul.f32 1.0, %v2098
        %v2102 = vcombine.low %v2097, %v2099
        %v2104 = vunpack.c.l.s4 1966171168
        %v2105 = vunpack.c.0.s8 %v2104
        %v2106 = vlaneseq
        %v2107 = vshrl.u32 %v2106, 7
        %v2108 = vsub.s32 %v2105, %v2107
        %v2109 = vrot.slane %v2102, %v2108
        %v2111 = vunpack.c.l.s4 1966171168
        %v2112 = vunpack.c.0.s8 %v2111
        %v2113 = vlaneseq
        %v2114 = vshrl.u32 %v2113, 7
        %v2115 = vsub.s32 %v2112, %v2114
        %v2116 = vrot.slane %v2109, %v2115
        %v2118 = vlaneseq
        %vm2119 = vcmp.ge.s32.totalorder %v2118, 0
        %vm2120 = vcmp.lt.s32.totalorder %v2118, 256
        %vm2121 = vmand %vm2119, %vm2120
        %2122 = vst.msk [vmem:[%s386] sm:$0x3] %vm2121, %v2116
        %s2123 = sand.u32 %s172, 1
        %s2124 = scalar_lea.sflag [#allocation4], %s2123
        %s2125 = sand.u32 %s172, 1
        %s2126 = smul.addr %s2125, 64
        %s2127 = scalar_lea.vmem [#allocation8], %s2126
        %s2128 = sand.u32 %s31, 1
        %s2129 = scalar_lea.sflag [#allocation10], %s2128
        %s2130 = sand.u32 %s200, 1
        %s2131 = smul.addr %s2130, 32
        %s2132 = scalar_lea.vmem [#allocation9], %s2131
        %s2133 = sand.u32 %s31, 1
        %s2134 = scalar_lea.sflag [#allocation10], %s2133
        %s2135 = sand.u32 %s228, 1
        %s2136 = smul.addr %s2135, 2
        %s2137 = scalar_lea.vmem [#allocation11], %s2136
        // Predicated region
        $region53: #{tpu_custom_call.1} parent=39 // pred_check
          %p2138 = pneg %p182
        $region54: #{tpu_custom_call.1} parent=39 // pred_check_branch
          %2140 = sbr.rel (%p2138) target = $region56
        $region55: #{tpu_custom_call.1} parent=39 // pred_region
          %s2141 = smul.u32 2, %s36
          %s2143 = ssub.s32 1024, 1024
          %2144 = vsyncadd %s2124, %s2143
          %s2145 = smul.addr %s35, 8
          %s2146 = sadd.s32 %s2141, %s2145
          %s2147 = smul.addr %s2146, 128
          %s2148 = scalar_lea.hbm %s5, %s2147
          %s2149 = sshll.u32 %s2127, 4
          %s2150 = int_to_ptr.vmem [resolvable:$true] %s2149
          %2155 = dma.vmem_to_hbm [thread:$0]  %s2150, 1024, %s2148, %s2124, 256, 256, 16
        $region56: #{tpu_custom_call.1} parent=39 // pred_fallthru
          _
        // Predicated region
        $region57: #{tpu_custom_call.1} parent=39 // pred_check
          %p2156 = pneg %p210
        $region58: #{tpu_custom_call.1} parent=39 // pred_check_branch
          %2158 = sbr.rel (%p2156) target = $region60
        $region59: #{tpu_custom_call.1} parent=39 // pred_region
          %s2159 = smul.u32 2, %s36
          %s2161 = ssub.s32 512, 512
          %2162 = vsyncadd %s2129, %s2161
          %s2163 = smul.addr %s35, 4
          %s2164 = sadd.s32 %s2159, %s2163
          %s2165 = smul.addr %s2164, 128
          %s2166 = scalar_lea.hbm %s6, %s2165
          %s2167 = sshll.u32 %s2132, 4
          %s2168 = int_to_ptr.vmem [resolvable:$true] %s2167
          %2173 = dma.vmem_to_hbm [thread:$0]  %s2168, 512, %s2166, %s2129, 256, 256, 16
        $region60: #{tpu_custom_call.1} parent=39 // pred_fallthru
          _
        // Predicated region
        $region61: #{tpu_custom_call.1} parent=39 // pred_check
          %p2174 = pneg %p238
        $region62: #{tpu_custom_call.1} parent=39 // pred_check_branch
          %2176 = sbr.rel (%p2174) target = $region64
        $region63: #{tpu_custom_call.1} parent=39 // pred_region
          %s2177 = smul.u32 2, %s36
          %s2179 = ssub.s32 32, 32
          %2180 = vsyncadd %s2134, %s2179
          %s2181 = smul.addr %s35, 2
          %s2182 = sadd.s32 %s2177, %s2181
          %s2183 = smul.addr %s2182, 16
          %s2184 = scalar_lea.hbm %s7, %s2183
          %s2186 = sshll.u32 %s2137, 4
          %s2187 = int_to_ptr.vmem [resolvable:$true] %s2186
          %2189 = dma.vmem_to_hbm [thread:$0]  %s2187, 32, %s2184, %s2134
        $region64: #{tpu_custom_call.1} parent=39 // pred_fallthru
          _
      $region40: #{tpu_custom_call.1} parent=5 // pred_fallthru
        _
      %p2190 = scmp.le.s32.totalorder 2, %s26
      // Predicated region
      $region65: #{tpu_custom_call.1} parent=5 // pred_check
        %p2191 = pneg %p2190
      $region66: #{tpu_custom_call.1} parent=5 // pred_check_branch
        %2193 = sbr.rel (%p2191) target = $region68
      $region67: #{tpu_custom_call.1} parent=5 // pred_region
        %s2194 = ssub.s32 %s26, 2
        // Predicated region
        $region69: #{tpu_custom_call.1} parent=67 // pred_check
          %p2195 = pneg %p188
        $region70: #{tpu_custom_call.1} parent=67 // pred_check_branch
          %2197 = sbr.rel (%p2195) target = $region72
        $region71: #{tpu_custom_call.1} parent=67 // pred_region
          %s2198 = sand.u32 %s173, 1
          %s2199 = scalar_lea.sflag [#allocation4], %s2198
          %s2200 = sand.u32 %s173, 1
          %s2201 = smul.addr %s2200, 64
          %s2202 = scalar_lea.vmem [#allocation8], %s2201
          %2203 = dma.done %s2199, 1024
        $region72: #{tpu_custom_call.1} parent=67 // pred_fallthru
          _
        // Predicated region
        $region73: #{tpu_custom_call.1} parent=67 // pred_check
          %p2204 = pneg %p216
        $region74: #{tpu_custom_call.1} parent=67 // pred_check_branch
          %2206 = sbr.rel (%p2204) target = $region76
        $region75: #{tpu_custom_call.1} parent=67 // pred_region
          %s2207 = sand.u32 %s32, 1
          %s2208 = scalar_lea.sflag [#allocation10], %s2207
          %s2209 = sand.u32 %s201, 1
          %s2210 = smul.addr %s2209, 32
          %s2211 = scalar_lea.vmem [#allocation9], %s2210
          %2212 = dma.done %s2208, 512
        $region76: #{tpu_custom_call.1} parent=67 // pred_fallthru
          _
        // Predicated region
        $region77: #{tpu_custom_call.1} parent=67 // pred_check
          %p2213 = pneg %p244
        $region78: #{tpu_custom_call.1} parent=67 // pred_check_branch
          %2215 = sbr.rel (%p2213) target = $region80
        $region79: #{tpu_custom_call.1} parent=67 // pred_region
          %s2216 = sand.u32 %s32, 1
          %s2217 = scalar_lea.sflag [#allocation10], %s2216
          %s2218 = sand.u32 %s229, 1
          %s2219 = smul.addr %s2218, 2
          %s2220 = scalar_lea.vmem [#allocation11], %s2219
          %2221 = dma.done %s2217, 32
        $region80: #{tpu_custom_call.1} parent=67 // pred_fallthru
          _
      $region68: #{tpu_custom_call.1} parent=5 // pred_fallthru
        _
    $region6: #{tpu_custom_call.1} parent=1 // loop_footer
      %s30 = sadd.s32 1, %s26
    $region7: #{tpu_custom_call.1} parent=1 // loop_footer_branch
      %25 = sbr.rel target = $region3
    $region8: #{tpu_custom_call.1} parent=1 // loop_exit
      _
    %2222 = vsyncpa [#allocation3], 1
    %s2223 = scalar_lea.sflag [#allocation3], 1
    %2224 = vsyncpa %s2223, 1
    %2225 = vsyncpa [#allocation6], 1
    %s2226 = scalar_lea.sflag [#allocation6], 1
    %2227 = vsyncpa %s2226, 1
    %2228 = vsyncpa [#allocation4], 1
    %s2229 = scalar_lea.sflag [#allocation4], 1
    %2230 = vsyncpa %s2229, 1
    %2231 = vsyncpa [#allocation10], 1
    %s2232 = scalar_lea.sflag [#allocation10], 1
    %2233 = vsyncpa %s2232, 1

</llo_original>
